<compile_context>
chip_gen: v6e
topology: v6e:2x2x1
jax: 0.10.0
libtpu: 0.0.40
codegen_flags: <defaults>
</compile_context>

<pallas_src>
import functools

import jax
import jax.numpy as jnp
from jax.experimental import pallas as pl
from jax.experimental.pallas import tpu as pltpu

LANE = 128


def _round_up(x, m):
    return ((x + m - 1) // m) * m


def _pad2(a, rows, cols):
    return jnp.zeros((rows, cols), a.dtype).at[: a.shape[0], : a.shape[1]].set(a)


# ----------------------------------------------------------------------------
# Fused kernel: all GINConv layers + global_add_pool + head MLP.
# grid = (num_layers, num_row_tiles)   (both sequential / "arbitrary")
# ----------------------------------------------------------------------------
def _gin_fused_kernel(x_ref, a_ref, pool_ref,
                      w1_ref, b1_ref, w2_ref, b2_ref,
                      mw1_ref, mb1_ref, mw2_ref, mb2_ref,
                      o_ref, buf, pacc, *, tile_m, a_resident):
    l = pl.program_id(0)               # layer index     (outer)
    i = pl.program_id(1)               # node row tile   (inner)
    num_layers = pl.num_programs(0)
    num_tiles = pl.num_programs(1)
    row0 = pl.multiple_of(i * tile_m, tile_m)

    # One-shot seed of the ping-pong activation buffer (replaces the old
    # per-layer h_prev <- h_next VMEM copy).
    @pl.when((l == 0) & (i == 0))
    def _():
        buf[0] = x_ref[...]

    # Resident A: slice the row slab in-kernel (A is DMA'd exactly once).
    # Streamed fallback: the BlockSpec already delivers the (tile_m, n_pad) slab.
    a_slab = a_ref[pl.ds(row0, tile_m), :] if a_resident else a_ref[...]

    # GINConv(train_eps=False): nn(((A + I) @ H)[row tile]).
    # bf16 x bf16 -> f32 accumulation on the MXU.
    agg = jnp.dot(a_slab, buf[l % 2], preferred_element_type=jnp.float32)

    # 2-layer conv MLP + outer F.relu (f32 accumulators, f32 bias adds).
    h = jnp.dot(agg.astype(jnp.bfloat16), w1_ref[...],
                preferred_element_type=jnp.float32) + b1_ref[...]
    h = jnp.maximum(h, 0.0)
    h = jnp.dot(h.astype(jnp.bfloat16), w2_ref[...],
                preferred_element_type=jnp.float32) + b2_ref[...]
    h = jnp.maximum(h, 0.0)
    h_bf16 = h.astype(jnp.bfloat16)

    last_layer = l == num_layers - 1

    # Non-final layers: single store into the other ping-pong buffer.
    # No o_ref write, no HBM writeback.
    @pl.when(jnp.logical_not(last_layer))
    def _():
        buf[(l + 1) % 2, pl.ds(row0, tile_m), :] = h_bf16

    # Final layer: fused global_add_pool + head MLP.
    @pl.when(last_layer)
    def _():
        @pl.when(i == 0)
        def _():
            pacc[...] = jnp.zeros_like(pacc)

        # Partial pooled sum over this row tile (pool slab is (g_pad, tile_m)).
        pacc[...] += jnp.dot(pool_ref[...], h_bf16,
                             preferred_element_type=jnp.float32)

        @pl.when(i == num_tiles - 1)
        def _():
            g = jnp.dot(pacc[...].astype(jnp.bfloat16), mw1_ref[...],
                        preferred_element_type=jnp.float32) + mb1_ref[...]
            g = jnp.maximum(g, 0.0)
            # Dropout(0.5) is identity at inference.
            # TODO(synk): training-mode dropout (random mask + 1/keep scaling).
            o_ref[...] = jnp.dot(g.astype(jnp.bfloat16), mw2_ref[...],
                                 preferred_element_type=jnp.float32) + mb2_ref[...]


def gin_fused(x_pad, a_pad, pool_mat, w1s, b1s, w2s, b2s,
              mw1, mb1, mw2, mb2, *, tile_m):
    n_pad, f = x_pad.shape
    num_layers = w1s.shape[0]
    g_pad = pool_mat.shape[0]
    o_pad = mw2.shape[1]
    num_tiles = n_pad // tile_m
    grid = (num_layers, num_tiles)

    a_bytes = n_pad * n_pad * 2                       # bf16
    a_resident = a_bytes <= 20 * 1024 * 1024          # leave VMEM headroom on v7x

    if a_resident:
        a_spec = pl.BlockSpec((n_pad, n_pad), lambda l, i: (0, 0))     # resident
    else:
        a_spec = pl.BlockSpec((tile_m, n_pad), lambda l, i: (i, 0))    # streamed slab

    flops = int(num_layers * (2 * n_pad * n_pad * f + 4 * n_pad * f * f)
                + 2 * g_pad * n_pad * f
                + 2 * g_pad * f * f + 2 * g_pad * f * o_pad)
    a_traffic = a_bytes if a_resident else a_bytes * num_layers
    bytes_accessed = int(a_traffic + x_pad.size * 2 + pool_mat.size * 2
                         + (w1s.size + w2s.size + mw1.size + mw2.size) * 2
                         + (b1s.size + b2s.size + mb1.size + mb2.size) * 4
                         + g_pad * o_pad * 4)

    # VMEM budget: resident A (or 2-3 streamed slabs) + 2x x window + ping-pong
    # activations + small weights/accumulators; clamp to 48 MiB (v7x-safe).
    vmem_need = ((a_bytes if a_resident else 3 * tile_m * n_pad * 2)
                 + 2 * x_pad.size * 2 + 2 * n_pad * f * 2 + 4 * 1024 * 1024)
    vmem_limit = int(min(max(vmem_need, 32 * 1024 * 1024), 48 * 1024 * 1024))

    kernel = functools.partial(_gin_fused_kernel, tile_m=tile_m,
                               a_resident=a_resident)

    return pl.pallas_call(
        kernel,
        out_shape=jax.ShapeDtypeStruct((g_pad, o_pad), jnp.float32),
        grid=grid,
        in_specs=[
            pl.BlockSpec((n_pad, f), lambda l, i: (0, 0)),       # x (seeds buf[0])
            a_spec,                                              # (A + I)
            pl.BlockSpec((g_pad, tile_m), lambda l, i: (0, i)),  # pool columns
            pl.BlockSpec((None, f, f), lambda l, i: (l, 0, 0)),  # conv W1[l]
            pl.BlockSpec((None, 1, f), lambda l, i: (l, 0, 0)),  # conv b1[l]
            pl.BlockSpec((None, f, f), lambda l, i: (l, 0, 0)),  # conv W2[l]
            pl.BlockSpec((None, 1, f), lambda l, i: (l, 0, 0)),  # conv b2[l]
            pl.BlockSpec((f, f), lambda l, i: (0, 0)),           # head W1
            pl.BlockSpec((1, f), lambda l, i: (0, 0)),           # head b1
            pl.BlockSpec((f, o_pad), lambda l, i: (0, 0)),       # head W2
            pl.BlockSpec((1, o_pad), lambda l, i: (0, 0)),       # head b2
        ],
        out_specs=pl.BlockSpec((g_pad, o_pad), lambda l, i: (0, 0)),
        scratch_shapes=[
            pltpu.VMEM((2, n_pad, f), jnp.bfloat16),   # ping-pong activations
            pltpu.VMEM((g_pad, f), jnp.float32),       # pooled-sum accumulator
        ],
        compiler_params=pltpu.CompilerParams(
            # Layer axis MUST be sequential (VMEM carry + "last write wins").
            dimension_semantics=("arbitrary", "arbitrary"),
            vmem_limit_bytes=vmem_limit,
        ),
        cost_estimate=pl.CostEstimate(flops=flops, transcendentals=0,
                                      bytes_accessed=bytes_accessed),
    )(x_pad, a_pad, pool_mat, w1s, b1s, w2s, b2s, mw1, mb1, mw2, mb2)


# ----------------------------------------------------------------------------
# Parameter init (PyTorch nn.Linear defaults) and forward glue.
# ----------------------------------------------------------------------------
def init_linear(key, fan_in, fan_out):
    kw, kb = jax.random.split(key)
    bound = 1.0 / float(fan_in) ** 0.5
    w = jax.random.uniform(kw, (fan_in, fan_out), jnp.float32, -bound, bound)
    b = jax.random.uniform(kb, (1, fan_out), jnp.float32, -bound, bound)
    return w, b


def init_gin_params(key, in_channels, hidden_channels, out_channels, num_layers):
    keys = jax.random.split(key, 2 * num_layers + 2)
    conv_params = []
    c_in = in_channels
    for l in range(num_layers):
        w1, b1 = init_linear(keys[2 * l], c_in, hidden_channels)
        w2, b2 = init_linear(keys[2 * l + 1], hidden_channels, hidden_channels)
        conv_params.append((w1, b1, w2, b2))
        c_in = hidden_channels
    mw1, mb1 = init_linear(keys[-2], hidden_channels, hidden_channels)
    mw2, mb2 = init_linear(keys[-1], hidden_channels, out_channels)
    return conv_params, (mw1, mb1, mw2, mb2)


def gin_forward(x, edge_index, batch, num_graphs, conv_params, mlp_params, *, tile_m=256):
    n, c_in = x.shape
    hidden = conv_params[0][0].shape[1]
    out_dim = mlp_params[2].shape[1]

    f = _round_up(max(c_in, hidden), LANE)       # lane-dense feature width
    o_pad = _round_up(out_dim, LANE)
    n_pad = _round_up(n, tile_m)
    g_pad = _round_up(num_graphs, 8)

    # Plain-JAX glue: dense (A + I) and pooling matrix (entries are small exact
    # integers -> lossless in bf16).  NOTE: for repeated calls on the same graph,
    # cache a_pad / pool_mat — this O(N^2) scatter is the non-kernel cost.
    src, dst = edge_index[0], edge_index[1]
    adj = jnp.zeros((n_pad, n_pad), jnp.float32).at[dst, src].add(1.0)
    node_ids = jnp.arange(n)
    a_pad = adj.at[node_ids, node_ids].add(1.0).astype(jnp.bfloat16)  # self-loops on real rows only

    x_pad = _pad2(x.astype(jnp.float32), n_pad, f).astype(jnp.bfloat16)

    pool_mat = (jnp.zeros((g_pad, n_pad), jnp.float32)
                .at[batch, jnp.arange(n)].set(1.0).astype(jnp.bfloat16))

    # Zero-padded, per-layer stacked conv weights (padded channels stay zero
    # through every layer for real rows).
    w1s = jnp.stack([_pad2(w1, f, f) for (w1, _, _, _) in conv_params]).astype(jnp.bfloat16)
    b1s = jnp.stack([_pad2(b1, 1, f) for (_, b1, _, _) in conv_params])
    w2s = jnp.stack([_pad2(w2, f, f) for (_, _, w2, _) in conv_params]).astype(jnp.bfloat16)
    b2s = jnp.stack([_pad2(b2, 1, f) for (_, _, _, b2) in conv_params])

    mw1, mb1, mw2, mb2 = mlp_params
    mw1p = _pad2(mw1, f, f).astype(jnp.bfloat16)
    mb1p = _pad2(mb1, 1, f)
    mw2p = _pad2(mw2, f, o_pad).astype(jnp.bfloat16)
    mb2p = _pad2(mb2, 1, o_pad)

    out = gin_fused(x_pad, a_pad, pool_mat, w1s, b1s, w2s, b2s,
                    mw1p, mb1p, mw2p, mb2p, tile_m=tile_m)
    return out[:num_graphs, :out_dim]


if __name__ == "__main__":
    key = jax.random.PRNGKey(0)
    N, E, G = 300, 900, 4
    in_channels, hidden_channels, out_channels, num_layers = 8, 32, 4, 2

    k_x, k_src, k_dst, k_params = jax.random.split(key, 4)
    x = jax.random.normal(k_x, (N, in_channels), jnp.float32)
    src = jax.random.randint(k_src, (E,), 0, N, dtype=jnp.int32)
    dst = jax.random.randint(k_dst, (E,), 0, N, dtype=jnp.int32)
    edge_index = jnp.stack([src, dst], axis=0)                 # [2, E]
    batch = ((jnp.arange(N) * G) // N).astype(jnp.int32)       # [N] sorted graph ids

    conv_params, mlp_params = init_gin_params(
        k_params, in_channels, hidden_channels, out_channels, num_layers)

    out = gin_forward(x, edge_index, batch, G, conv_params, mlp_params)
    out = jax.block_until_ready(out)
    assert out.shape == (G, out_channels)
    print("KERNEL_OK")
</pallas_src>

<mosaic_0001>
module attributes {stable_mosaic.version = 11 : i64} {
  func.func @_gin_fused_kernel(%arg0: i32, %arg1: i32, %arg2: memref<512x128xbf16, #tpu.memory_space<vmem>>, %arg3: memref<512x512xbf16, #tpu.memory_space<vmem>>, %arg4: memref<8x256xbf16, #tpu.memory_space<vmem>>, %arg5: memref<1x128x128xbf16, #tpu.memory_space<vmem>>, %arg6: memref<1x1x128xf32, #tpu.memory_space<vmem>>, %arg7: memref<1x128x128xbf16, #tpu.memory_space<vmem>>, %arg8: memref<1x1x128xf32, #tpu.memory_space<vmem>>, %arg9: memref<128x128xbf16, #tpu.memory_space<vmem>>, %arg10: memref<1x128xf32, #tpu.memory_space<vmem>>, %arg11: memref<128x128xbf16, #tpu.memory_space<vmem>>, %arg12: memref<1x128xf32, #tpu.memory_space<vmem>>, %arg13: memref<8x128xf32, #tpu.memory_space<vmem>>, %arg14: memref<2x512x128xbf16, #tpu.memory_space<vmem>>, %arg15: memref<8x128xf32, #tpu.memory_space<vmem>>) attributes {dimension_semantics = [#tpu.dimension_semantics<arbitrary>, #tpu.dimension_semantics<arbitrary>], iteration_bounds = array<i64: 2, 2>, scalar_prefetch = 0 : i64, scratch_operands = 2 : i64, tpu.core_type = #tpu.core_type<tc>, window_params = [{pipeline_mode = #tpu.pipeline_mode<synchronous>, transform_indices = @transform_0, window_bounds = array<i64: 512, 128>}, {pipeline_mode = #tpu.pipeline_mode<synchronous>, transform_indices = @transform_1, window_bounds = array<i64: 512, 512>}, {transform_indices = @transform_2, window_bounds = array<i64: 8, 256>}, {transform_indices = @transform_3, window_bounds = array<i64: 1, 128, 128>}, {transform_indices = @transform_4, window_bounds = array<i64: 1, 1, 128>}, {transform_indices = @transform_5, window_bounds = array<i64: 1, 128, 128>}, {transform_indices = @transform_6, window_bounds = array<i64: 1, 1, 128>}, {pipeline_mode = #tpu.pipeline_mode<synchronous>, transform_indices = @transform_7, window_bounds = array<i64: 128, 128>}, {pipeline_mode = #tpu.pipeline_mode<synchronous>, transform_indices = @transform_8, window_bounds = array<i64: 1, 128>}, {pipeline_mode = #tpu.pipeline_mode<synchronous>, transform_indices = @transform_9, window_bounds = array<i64: 128, 128>}, {pipeline_mode = #tpu.pipeline_mode<synchronous>, transform_indices = @transform_10, window_bounds = array<i64: 1, 128>}, {pipeline_mode = #tpu.pipeline_mode<synchronous>, transform_indices = @transform_11, window_bounds = array<i64: 8, 128>}]} {
    %c256_i32 = arith.constant 256 : i32
    %0 = arith.muli %arg1, %c256_i32 : i32
    %1 = tpu.assume_multiple %0, 256 : i32
    %c0_i32 = arith.constant 0 : i32
    %2 = arith.cmpi eq, %arg0, %c0_i32 : i32
    %c0_i32_0 = arith.constant 0 : i32
    %3 = arith.cmpi eq, %arg1, %c0_i32_0 : i32
    %4 = arith.andi %2, %3 : i1
    %5 = arith.extui %4 : i1 to i32
    %c0_i32_1 = arith.constant 0 : i32
    %6 = arith.cmpi ne, %5, %c0_i32_1 : i32
    scf.if %6 {
      %c0_27 = arith.constant 0 : index
      %c0_28 = arith.constant 0 : index
      %50 = vector.load %arg2[%c0_27, %c0_28] : memref<512x128xbf16, #tpu.memory_space<vmem>>, vector<512x128xbf16>
      %c0_29 = arith.constant 0 : index
      %c0_30 = arith.constant 0 : index
      %c0_31 = arith.constant 0 : index
      %51 = vector.load %arg14[%c0_29, %c0_30, %c0_31] : memref<2x512x128xbf16, #tpu.memory_space<vmem>>, vector<1x512x128xbf16>
      %52 = vector.shape_cast %51 : vector<1x512x128xbf16> to vector<512x128xbf16>
      %53 = vector.shape_cast %50 : vector<512x128xbf16> to vector<1x512x128xbf16>
      tpu.vector_store %arg14[%c0_29, %c0_30, %c0_31], %53 {strides = array<i32>} : memref<2x512x128xbf16, #tpu.memory_space<vmem>>, vector<1x512x128xbf16>,
    } else {
    }
    %7 = arith.index_cast %1 : i32 to index
    %c0 = arith.constant 0 : index
    %8 = vector.load %arg3[%7, %c0] : memref<512x512xbf16, #tpu.memory_space<vmem>>, vector<256x512xbf16>
    %c2_i32 = arith.constant 2 : i32
    %c0_i32_2 = arith.constant 0 : i32
    %9 = arith.cmpi eq, %c2_i32, %c0_i32_2 : i32
    %c1_i32 = arith.constant 1 : i32
    %10 = arith.select %9, %c1_i32, %c2_i32 : i32
    %11 = arith.remsi %arg0, %10 : i32
    %c0_i32_3 = arith.constant 0 : i32
    %12 = arith.cmpi ne, %11, %c0_i32_3 : i32
    %c0_i32_4 = arith.constant 0 : i32
    %13 = arith.cmpi slt, %11, %c0_i32_4 : i32
    %c0_i32_5 = arith.constant 0 : i32
    %14 = arith.cmpi slt, %10, %c0_i32_5 : i32
    %15 = arith.xori %13, %14 : i1
    %16 = arith.andi %15, %12 : i1
    %17 = arith.addi %11, %10 : i32
    %18 = arith.select %16, %17, %11 : i32
    %19 = arith.index_cast %18 : i32 to index
    %c0_6 = arith.constant 0 : index
    %c0_7 = arith.constant 0 : index
    %20 = vector.load %arg14[%19, %c0_6, %c0_7] : memref<2x512x128xbf16, #tpu.memory_space<vmem>>, vector<1x512x128xbf16>
    %21 = vector.shape_cast %20 : vector<1x512x128xbf16> to vector<512x128xbf16>
    %cst = arith.constant dense<0.000000e+00> : vector<256x128xf32>
    %22 = tpu.matmul %8, %21, %cst {dimension_numbers = #tpu.dot_dimension_numbers<[1], [0], [0], [1], [0, 0, 1, 1], [], []>} : vector<256x512xbf16>, vector<512x128xbf16>, vector<256x128xf32> -> vector<256x128xf32>
    %23 = arith.truncf %22 : vector<256x128xf32> to vector<256x128xbf16>
    %c0_8 = arith.constant 0 : index
    %c0_9 = arith.constant 0 : index
    %c0_10 = arith.constant 0 : index
    %24 = vector.load %arg5[%c0_8, %c0_9, %c0_10] : memref<1x128x128xbf16, #tpu.memory_space<vmem>>, vector<1x128x128xbf16>
    %25 = vector.shape_cast %24 : vector<1x128x128xbf16> to vector<128x128xbf16>
    %cst_11 = arith.constant dense<0.000000e+00> : vector<256x128xf32>
    %26 = tpu.matmul %23, %25, %cst_11 {dimension_numbers = #tpu.dot_dimension_numbers<[1], [0], [0], [1], [0, 0, 1, 1], [], []>} : vector<256x128xbf16>, vector<128x128xbf16>, vector<256x128xf32> -> vector<256x128xf32>
    %c0_12 = arith.constant 0 : index
    %c0_13 = arith.constant 0 : index
    %c0_14 = arith.constant 0 : index
    %27 = vector.load %arg6[%c0_12, %c0_13, %c0_14] : memref<1x1x128xf32, #tpu.memory_space<vmem>>, vector<1x1x128xf32>
    %28 = vector.shape_cast %27 : vector<1x1x128xf32> to vector<1x128xf32>
    %29 = vector.broadcast %28 : vector<1x128xf32> to vector<256x128xf32>
    %30 = arith.addf %26, %29 : vector<256x128xf32>
    %cst_15 = arith.constant 0.000000e+00 : f32
    %31 = vector.broadcast %cst_15 : f32 to vector<256x128xf32>
    %32 = arith.maximumf %30, %31 : vector<256x128xf32>
    %33 = arith.truncf %32 : vector<256x128xf32> to vector<256x128xbf16>
    %c0_16 = arith.constant 0 : index
    %c0_17 = arith.constant 0 : index
    %c0_18 = arith.constant 0 : index
    %34 = vector.load %arg7[%c0_16, %c0_17, %c0_18] : memref<1x128x128xbf16, #tpu.memory_space<vmem>>, vector<1x128x128xbf16>
    %35 = vector.shape_cast %34 : vector<1x128x128xbf16> to vector<128x128xbf16>
    %cst_19 = arith.constant dense<0.000000e+00> : vector<256x128xf32>
    %36 = tpu.matmul %33, %35, %cst_19 {dimension_numbers = #tpu.dot_dimension_numbers<[1], [0], [0], [1], [0, 0, 1, 1], [], []>} : vector<256x128xbf16>, vector<128x128xbf16>, vector<256x128xf32> -> vector<256x128xf32>
    %c0_20 = arith.constant 0 : index
    %c0_21 = arith.constant 0 : index
    %c0_22 = arith.constant 0 : index
    %37 = vector.load %arg8[%c0_20, %c0_21, %c0_22] : memref<1x1x128xf32, #tpu.memory_space<vmem>>, vector<1x1x128xf32>
    %38 = vector.shape_cast %37 : vector<1x1x128xf32> to vector<1x128xf32>
    %39 = vector.broadcast %38 : vector<1x128xf32> to vector<256x128xf32>
    %40 = arith.addf %36, %39 : vector<256x128xf32>
    %cst_23 = arith.constant 0.000000e+00 : f32
    %41 = vector.broadcast %cst_23 : f32 to vector<256x128xf32>
    %42 = arith.maximumf %40, %41 : vector<256x128xf32>
    %43 = arith.truncf %42 : vector<256x128xf32> to vector<256x128xbf16>
    %c1_i32_24 = arith.constant 1 : i32
    %44 = arith.cmpi eq, %arg0, %c1_i32_24 : i32
    %true = arith.constant true
    %45 = arith.xori %44, %true : i1
    %46 = arith.extui %45 : i1 to i32
    %c0_i32_25 = arith.constant 0 : i32
    %47 = arith.cmpi ne, %46, %c0_i32_25 : i32
    scf.if %47 {
      %c1_i32_27 = arith.constant 1 : i32
      %50 = arith.addi %arg0, %c1_i32_27 : i32
      %c2_i32_28 = arith.constant 2 : i32
      %c0_i32_29 = arith.constant 0 : i32
      %51 = arith.cmpi eq, %c2_i32_28, %c0_i32_29 : i32
      %c1_i32_30 = arith.constant 1 : i32
      %52 = arith.select %51, %c1_i32_30, %c2_i32_28 : i32
      %53 = arith.remsi %50, %52 : i32
      %c0_i32_31 = arith.constant 0 : i32
      %54 = arith.cmpi ne, %53, %c0_i32_31 : i32
      %c0_i32_32 = arith.constant 0 : i32
      %55 = arith.cmpi slt, %53, %c0_i32_32 : i32
      %c0_i32_33 = arith.constant 0 : i32
      %56 = arith.cmpi slt, %52, %c0_i32_33 : i32
      %57 = arith.xori %55, %56 : i1
      %58 = arith.andi %57, %54 : i1
      %59 = arith.addi %53, %52 : i32
      %60 = arith.select %58, %59, %53 : i32
      %61 = arith.index_cast %60 : i32 to index
      %62 = arith.index_cast %1 : i32 to index
      %c0_34 = arith.constant 0 : index
      %63 = vector.load %arg14[%61, %62, %c0_34] : memref<2x512x128xbf16, #tpu.memory_space<vmem>>, vector<1x256x128xbf16>
      %64 = vector.shape_cast %63 : vector<1x256x128xbf16> to vector<256x128xbf16>
      %65 = vector.shape_cast %43 : vector<256x128xbf16> to vector<1x256x128xbf16>
      tpu.vector_store %arg14[%61, %62, %c0_34], %65 {strides = array<i32>} : memref<2x512x128xbf16, #tpu.memory_space<vmem>>, vector<1x256x128xbf16>,
    } else {
    }
    %48 = arith.extui %44 : i1 to i32
    %c0_i32_26 = arith.constant 0 : i32
    %49 = arith.cmpi ne, %48, %c0_i32_26 : i32
    scf.if %49 {
      %c0_i32_27 = arith.constant 0 : i32
      %50 = arith.cmpi eq, %arg1, %c0_i32_27 : i32
      %51 = arith.extui %50 : i1 to i32
      %c0_i32_28 = arith.constant 0 : i32
      %52 = arith.cmpi ne, %51, %c0_i32_28 : i32
      scf.if %52 {
        %cst_38 = arith.constant 0.000000e+00 : f32
        %61 = vector.broadcast %cst_38 : f32 to vector<8x128xf32>
        %c0_39 = arith.constant 0 : index
        %c0_40 = arith.constant 0 : index
        %62 = vector.load %arg15[%c0_39, %c0_40] : memref<8x128xf32, #tpu.memory_space<vmem>>, vector<8x128xf32>
        tpu.vector_store %arg15[%c0_39, %c0_40], %61 {strides = array<i32>} : memref<8x128xf32, #tpu.memory_space<vmem>>, vector<8x128xf32>,
      } else {
      }
      %c0_29 = arith.constant 0 : index
      %c0_30 = arith.constant 0 : index
      %53 = vector.load %arg15[%c0_29, %c0_30] : memref<8x128xf32, #tpu.memory_space<vmem>>, vector<8x128xf32>
      %c0_31 = arith.constant 0 : index
      %c0_32 = arith.constant 0 : index
      %54 = vector.load %arg4[%c0_31, %c0_32] : memref<8x256xbf16, #tpu.memory_space<vmem>>, vector<8x256xbf16>
      %cst_33 = arith.constant dense<0.000000e+00> : vector<8x128xf32>
      %55 = tpu.matmul %54, %43, %cst_33 {dimension_numbers = #tpu.dot_dimension_numbers<[1], [0], [0], [1], [0, 0, 1, 1], [], []>} : vector<8x256xbf16>, vector<256x128xbf16>, vector<8x128xf32> -> vector<8x128xf32>
      %56 = arith.addf %53, %55 : vector<8x128xf32>
      %c0_34 = arith.constant 0 : index
      %c0_35 = arith.constant 0 : index
      %57 = vector.load %arg15[%c0_34, %c0_35] : memref<8x128xf32, #tpu.memory_space<vmem>>, vector<8x128xf32>
      tpu.vector_store %arg15[%c0_34, %c0_35], %56 {strides = array<i32>} : memref<8x128xf32, #tpu.memory_space<vmem>>, vector<8x128xf32>,
      %c1_i32_36 = arith.constant 1 : i32
      %58 = arith.cmpi eq, %arg1, %c1_i32_36 : i32
      %59 = arith.extui %58 : i1 to i32
      %c0_i32_37 = arith.constant 0 : i32
      %60 = arith.cmpi ne, %59, %c0_i32_37 : i32
      scf.if %60 {
        %c0_38 = arith.constant 0 : index
        %c0_39 = arith.constant 0 : index
        %61 = vector.load %arg15[%c0_38, %c0_39] : memref<8x128xf32, #tpu.memory_space<vmem>>, vector<8x128xf32>
        %62 = arith.truncf %61 : vector<8x128xf32> to vector<8x128xbf16>
        %c0_40 = arith.constant 0 : index
        %c0_41 = arith.constant 0 : index
        %63 = vector.load %arg9[%c0_40, %c0_41] : memref<128x128xbf16, #tpu.memory_space<vmem>>, vector<128x128xbf16>
        %cst_42 = arith.constant dense<0.000000e+00> : vector<8x128xf32>
        %64 = tpu.matmul %62, %63, %cst_42 {dimension_numbers = #tpu.dot_dimension_numbers<[1], [0], [0], [1], [0, 0, 1, 1], [], []>} : vector<8x128xbf16>, vector<128x128xbf16>, vector<8x128xf32> -> vector<8x128xf32>
        %c0_43 = arith.constant 0 : index
        %c0_44 = arith.constant 0 : index
        %65 = vector.load %arg10[%c0_43, %c0_44] : memref<1x128xf32, #tpu.memory_space<vmem>>, vector<1x128xf32>
        %66 = vector.broadcast %65 : vector<1x128xf32> to vector<8x128xf32>
        %67 = arith.addf %64, %66 : vector<8x128xf32>
        %cst_45 = arith.constant 0.000000e+00 : f32
        %68 = vector.broadcast %cst_45 : f32 to vector<8x128xf32>
        %69 = arith.maximumf %67, %68 : vector<8x128xf32>
        %70 = arith.truncf %69 : vector<8x128xf32> to vector<8x128xbf16>
        %c0_46 = arith.constant 0 : index
        %c0_47 = arith.constant 0 : index
        %71 = vector.load %arg11[%c0_46, %c0_47] : memref<128x128xbf16, #tpu.memory_space<vmem>>, vector<128x128xbf16>
        %cst_48 = arith.constant dense<0.000000e+00> : vector<8x128xf32>
        %72 = tpu.matmul %70, %71, %cst_48 {dimension_numbers = #tpu.dot_dimension_numbers<[1], [0], [0], [1], [0, 0, 1, 1], [], []>} : vector<8x128xbf16>, vector<128x128xbf16>, vector<8x128xf32> -> vector<8x128xf32>
        %c0_49 = arith.constant 0 : index
        %c0_50 = arith.constant 0 : index
        %73 = vector.load %arg12[%c0_49, %c0_50] : memref<1x128xf32, #tpu.memory_space<vmem>>, vector<1x128xf32>
        %74 = vector.broadcast %73 : vector<1x128xf32> to vector<8x128xf32>
        %75 = arith.addf %72, %74 : vector<8x128xf32>
        %c0_51 = arith.constant 0 : index
        %c0_52 = arith.constant 0 : index
        %76 = vector.load %arg13[%c0_51, %c0_52] : memref<8x128xf32, #tpu.memory_space<vmem>>, vector<8x128xf32>
        tpu.vector_store %arg13[%c0_51, %c0_52], %75 {strides = array<i32>} : memref<8x128xf32, #tpu.memory_space<vmem>>, vector<8x128xf32>,
      } else {
      }
    } else {
    }
    return
  }
  func.func @transform_0(%arg0: i32, %arg1: i32) -> (i32, i32) {
    %c0_i32 = arith.constant 0 : i32
    %c0_i32_0 = arith.constant 0 : i32
    %c0_i32_1 = arith.constant 0 : i32
    return %c0_i32, %c0_i32_0 : i32, i32
  }
  func.func @transform_1(%arg0: i32, %arg1: i32) -> (i32, i32) {
    %c0_i32 = arith.constant 0 : i32
    %c0_i32_0 = arith.constant 0 : i32
    %c0_i32_1 = arith.constant 0 : i32
    return %c0_i32, %c0_i32_0 : i32, i32
  }
  func.func @transform_2(%arg0: i32, %arg1: i32) -> (i32, i32) {
    %c0_i32 = arith.constant 0 : i32
    %c0_i32_0 = arith.constant 0 : i32
    return %c0_i32, %arg1 : i32, i32
  }
  func.func @transform_3(%arg0: i32, %arg1: i32) -> (i32, i32, i32) {
    %c0_i32 = arith.constant 0 : i32
    %c0_i32_0 = arith.constant 0 : i32
    %c0_i32_1 = arith.constant 0 : i32
    return %arg0, %c0_i32, %c0_i32_0 : i32, i32, i32
  }
  func.func @transform_4(%arg0: i32, %arg1: i32) -> (i32, i32, i32) {
    %c0_i32 = arith.constant 0 : i32
    %c0_i32_0 = arith.constant 0 : i32
    %c0_i32_1 = arith.constant 0 : i32
    return %arg0, %c0_i32, %c0_i32_0 : i32, i32, i32
  }
  func.func @transform_5(%arg0: i32, %arg1: i32) -> (i32, i32, i32) {
    %c0_i32 = arith.constant 0 : i32
    %c0_i32_0 = arith.constant 0 : i32
    %c0_i32_1 = arith.constant 0 : i32
    return %arg0, %c0_i32, %c0_i32_0 : i32, i32, i32
  }
  func.func @transform_6(%arg0: i32, %arg1: i32) -> (i32, i32, i32) {
    %c0_i32 = arith.constant 0 : i32
    %c0_i32_0 = arith.constant 0 : i32
    %c0_i32_1 = arith.constant 0 : i32
    return %arg0, %c0_i32, %c0_i32_0 : i32, i32, i32
  }
  func.func @transform_7(%arg0: i32, %arg1: i32) -> (i32, i32) {
    %c0_i32 = arith.constant 0 : i32
    %c0_i32_0 = arith.constant 0 : i32
    %c0_i32_1 = arith.constant 0 : i32
    return %c0_i32, %c0_i32_0 : i32, i32
  }
  func.func @transform_8(%arg0: i32, %arg1: i32) -> (i32, i32) {
    %c0_i32 = arith.constant 0 : i32
    %c0_i32_0 = arith.constant 0 : i32
    %c0_i32_1 = arith.constant 0 : i32
    return %c0_i32, %c0_i32_0 : i32, i32
  }
  func.func @transform_9(%arg0: i32, %arg1: i32) -> (i32, i32) {
    %c0_i32 = arith.constant 0 : i32
    %c0_i32_0 = arith.constant 0 : i32
    %c0_i32_1 = arith.constant 0 : i32
    return %c0_i32, %c0_i32_0 : i32, i32
  }
  func.func @transform_10(%arg0: i32, %arg1: i32) -> (i32, i32) {
    %c0_i32 = arith.constant 0 : i32
    %c0_i32_0 = arith.constant 0 : i32
    %c0_i32_1 = arith.constant 0 : i32
    return %c0_i32, %c0_i32_0 : i32, i32
  }
  func.func @transform_11(%arg0: i32, %arg1: i32) -> (i32, i32) {
    %c0_i32 = arith.constant 0 : i32
    %c0_i32_0 = arith.constant 0 : i32
    %c0_i32_1 = arith.constant 0 : i32
    return %c0_i32, %c0_i32_0 : i32, i32
  }
}

</mosaic_0001>

<llo_original>
// kernel: tpu_custom_call.1
$region0: #{tpu_custom_call.1}
  #allocation0 [shape = 'u32[]', space=smem, size = 0x4, offset = 0x4, fixed_abs, tag = 'smem constant byte address 0x4 - core index']
  #allocation1 [shape = 'u32[144,128]{1,0:T(1,128)}', space=vmem, size = 0x12000, scoped, tag = 'internal scratch']
  #allocation2 [shape = 'bf16[2,512,128]{2,1,0:T(8,128)(2,1)}', space=vmem, size = 0x40000, scoped, tag = 'scratch operand']
  #allocation3 [shape = 'f32[8,128]{1,0:T(8,128)}', space=vmem, size = 0x1000, scoped, tag = 'scratch operand']
  %s0 = inlined_call_operand.hbm [shape: bf16[512,128], index: 0, kind: input, shape index: {}]
  %s1 = inlined_call_operand.hbm [shape: bf16[512,512], index: 1, kind: input, shape index: {}]
  %s2 = inlined_call_operand.hbm [shape: bf16[8,512], index: 2, kind: input, shape index: {}]
  %s3 = inlined_call_operand.hbm [shape: bf16[2,128,128], index: 3, kind: input, shape index: {}]
  %s4 = inlined_call_operand.vmem [shape: f32[2,1,128], index: 4, kind: input, shape index: {}]
  %s5 = inlined_call_operand.hbm [shape: bf16[2,128,128], index: 5, kind: input, shape index: {}]
  %s6 = inlined_call_operand.vmem [shape: f32[2,1,128], index: 6, kind: input, shape index: {}]
  %s7 = inlined_call_operand.hbm [shape: bf16[128,128], index: 7, kind: input, shape index: {}]
  %s8 = inlined_call_operand.vmem [shape: f32[1,128], index: 8, kind: input, shape index: {}]
  %s9 = inlined_call_operand.hbm [shape: bf16[128,128], index: 9, kind: input, shape index: {}]
  %s10 = inlined_call_operand.vmem [shape: f32[1,128], index: 10, kind: input, shape index: {}]
  %s11 = inlined_call_operand.hbm [shape: f32[8,128], index: 11, kind: output, shape index: {}]
  %s12 = sld [smem:[#allocation0]]
  $region125: #{tpu_custom_call.1} parent=0
    _
  %s14 = ssub.s32 1, %s12
  %s15 = scalar_select 0, %s14, %s12
  $region1: #{tpu_custom_call.1} parent=0
    #allocation4 [shape = 'u8[131072]{0}', space=vmem, size = 0x20000, scoped, tag = 'input window, operand 0, single buffered']
    #allocation5 [shape = 's32[2]{0}', space=sflag, size = 0x8, scoped, tag = 'scoped memory for tpu_custom_call.1']
    #allocation6 [shape = 's32[2]{0}', space=sflag, size = 0x8, scoped, tag = 'scoped memory for tpu_custom_call.1']
    #allocation7 [shape = 'u8[524288]{0}', space=vmem, size = 0x80000, scoped, tag = 'input window, operand 1, single buffered']
    #allocation8 [shape = 's32[1]{0}', space=sflag, size = 0x4, scoped, tag = 'scoped memory for tpu_custom_call.1']
    #allocation9 [shape = 'u8[8192]{0}', space=vmem, size = 0x2000, scoped, tag = 'input window, operand 2']
    #allocation10 [shape = 'u8[65536]{0}', space=vmem, size = 0x10000, scoped, tag = 'input window, operand 3']
    #allocation11 [shape = 'u8[65536]{0}', space=vmem, size = 0x10000, scoped, tag = 'input window, operand 5']
    #allocation12 [shape = 'u8[32768]{0}', space=vmem, size = 0x8000, scoped, tag = 'input window, operand 7, single buffered']
    #allocation13 [shape = 'u8[32768]{0}', space=vmem, size = 0x8000, scoped, tag = 'input window, operand 9, single buffered']
    #allocation14 [shape = 's32[1]{0}', space=sflag, size = 0x4, scoped, tag = 'scoped memory for tpu_custom_call.1']
    #allocation15 [shape = 'u8[4096]{0}', space=vmem, size = 0x1000, scoped, tag = 'output window, operand 0, single buffered']
    %16 = vsyncpa [#allocation5], 0
    %17 = vsyncpa [#allocation8], 0
    %18 = vsyncpa [#allocation14], 0
    %19 = vsyncpa [#allocation6], 0
    loop: start=0, step=1, limit=6
    $region2: #{tpu_custom_call.1} parent=1 // loop_pre_header
      _
    $region3: #{tpu_custom_call.1} parent=1 // loop_header
      %s21 = sphi 0, %s25
      %p22 = scmp.ge.s32.totalorder %s21, 6
      %s28 = sphi 0, %s40
      %s29 = sphi 0, %s36
      %s30 = sphi 0, %s28
      %s31 = sphi 0, %s29
      %s32 = sphi 0, %s30
      %s33 = sphi 0, %s31
      %s41 = sphi 0, %s41
      %s43 = sphi 0, %s41
      %s44 = sphi 0, %s43
      %s58 = sphi 0, %s44
      %s62 = sphi 0, %s62
      %s64 = sphi 0, %s62
      %s65 = sphi 0, %s64
      %s79 = sphi 0, %s65
      %s85 = sphi 0, %s87
      %s88 = sphi 0, %s85
      %s89 = sphi 0, %s88
      %s105 = sphi 0, %s89
      %s111 = sphi 0, %s113
      %s114 = sphi 0, %s111
      %s115 = sphi 0, %s114
      %s131 = sphi 0, %s115
      %s137 = sphi 0, %s139
      %s140 = sphi 0, %s137
      %s141 = sphi 0, %s140
      %s157 = sphi 0, %s141
      %s163 = sphi 0, %s165
      %s166 = sphi 0, %s163
      %s167 = sphi 0, %s166
      %s183 = sphi 0, %s167
      %s189 = sphi 0, %s191
      %s192 = sphi 0, %s189
      %s193 = sphi 0, %s192
      %s209 = sphi 0, %s193
      %s213 = sphi 0, %s213
      %s215 = sphi 0, %s213
      %s216 = sphi 0, %s215
      %s230 = sphi 0, %s216
      %s234 = sphi 0, %s234
      %s236 = sphi 0, %s234
      %s237 = sphi 0, %s236
      %s251 = sphi 0, %s237
      %s255 = sphi 0, %s255
      %s257 = sphi 0, %s255
      %s258 = sphi 0, %s257
      %s272 = sphi 0, %s258
      %s276 = sphi 0, %s276
      %s278 = sphi 0, %s276
      %s279 = sphi 0, %s278
      %s293 = sphi 0, %s279
      %s297 = sphi 0, %s297
      %s299 = sphi 0, %s297
      %s300 = sphi 0, %s299
      %s314 = sphi 0, %s300
    $region4: #{tpu_custom_call.1} parent=1 // loop_header_branch
      %24 = sbr.rel (%p22) target = $region8
    $region5: #{tpu_custom_call.1} parent=1 // loop_body
      %s26 = ssub.s32 %s21, 1
      %s27 = ssub.s32 %s21, 2
      %s34 = sadd.s32 1, %s29
      %p35 = scmp.ge.s32.totalorder %s34, 2
      %s36 = scalar_select %p35, 0, %s34
      %s37 = sadd.s32 1, %s28
      %s38 = scalar_select %p35, %s37, %s28
      %p39 = scmp.ge.s32.totalorder %s38, 2
      %s40 = scalar_select %p39, 0, %s38
      %s42 = sadd.s32 %s41, 1
      %p45 = scmp.eq.s32.totalorder %s21, 3
      %p46 = scmp.ne.s32.totalorder %s41, %s43
      %p47 = scmp.eq.s32.totalorder %s21, 0
      %p48 = por %p46, %p47
      %p49 = scmp.ne.s32.totalorder %s41, %s43
      %p50 = scmp.eq.s32.totalorder %s26, 3
      %p51 = por %p49, %p50
      %p52 = scmp.ne.s32.totalorder %s43, %s44
      %p53 = scmp.eq.s32.totalorder %s26, 0
      %p54 = por %p52, %p53
      %p55 = scmp.ne.s32.totalorder %s43, %s44
      %p56 = scmp.eq.s32.totalorder %s27, 3
      %p57 = por %p55, %p56
      %p59 = scmp.ne.s32.totalorder %s44, %s58
      %p60 = scmp.eq.s32.totalorder %s27, 0
      %p61 = por %p59, %p60
      %s63 = sadd.s32 %s62, 1
      %p66 = scmp.eq.s32.totalorder %s21, 3
      %p67 = scmp.ne.s32.totalorder %s62, %s64
      %p68 = scmp.eq.s32.totalorder %s21, 0
      %p69 = por %p67, %p68
      %p70 = scmp.ne.s32.totalorder %s62, %s64
      %p71 = scmp.eq.s32.totalorder %s26, 3
      %p72 = por %p70, %p71
      %p73 = scmp.ne.s32.totalorder %s64, %s65
      %p74 = scmp.eq.s32.totalorder %s26, 0
      %p75 = por %p73, %p74
      %p76 = scmp.ne.s32.totalorder %s64, %s65
      %p77 = scmp.eq.s32.totalorder %s27, 3
      %p78 = por %p76, %p77
      %p80 = scmp.ne.s32.totalorder %s65, %s79
      %p81 = scmp.eq.s32.totalorder %s27, 0
      %p82 = por %p80, %p81
      %s83 = ssub.s32 %s29, %s36
      %p84 = scmp.eq.s32.totalorder %s83, 0
      %s86 = sadd.s32 %s85, 1
      %s87 = scalar_select %p84, %s85, %s86
      %p90 = pneg %p84
      %p91 = scmp.eq.s32.totalorder %s21, 3
      %p92 = por %p90, %p91
      %p93 = scmp.ne.s32.totalorder %s85, %s88
      %p94 = scmp.eq.s32.totalorder %s21, 0
      %p95 = por %p93, %p94
      %p96 = scmp.ne.s32.totalorder %s85, %s88
      %p97 = scmp.eq.s32.totalorder %s26, 3
      %p98 = por %p96, %p97
      %p99 = scmp.ne.s32.totalorder %s88, %s89
      %p100 = scmp.eq.s32.totalorder %s26, 0
      %p101 = por %p99, %p100
      %p102 = scmp.ne.s32.totalorder %s88, %s89
      %p103 = scmp.eq.s32.totalorder %s27, 3
      %p104 = por %p102, %p103
      %p106 = scmp.ne.s32.totalorder %s89, %s105
      %p107 = scmp.eq.s32.totalorder %s27, 0
      %p108 = por %p106, %p107
      %s109 = ssub.s32 %s28, %s40
      %p110 = scmp.eq.s32.totalorder %s109, 0
      %s112 = sadd.s32 %s111, 1
      %s113 = scalar_select %p110, %s111, %s112
      %p116 = pneg %p110
      %p117 = scmp.eq.s32.totalorder %s21, 3
      %p118 = por %p116, %p117
      %p119 = scmp.ne.s32.totalorder %s111, %s114
      %p120 = scmp.eq.s32.totalorder %s21, 0
      %p121 = por %p119, %p120
      %p122 = scmp.ne.s32.totalorder %s111, %s114
      %p123 = scmp.eq.s32.totalorder %s26, 3
      %p124 = por %p122, %p123
      %p125 = scmp.ne.s32.totalorder %s114, %s115
      %p126 = scmp.eq.s32.totalorder %s26, 0
      %p127 = por %p125, %p126
      %p128 = scmp.ne.s32.totalorder %s114, %s115
      %p129 = scmp.eq.s32.totalorder %s27, 3
      %p130 = por %p128, %p129
      %p132 = scmp.ne.s32.totalorder %s115, %s131
      %p133 = scmp.eq.s32.totalorder %s27, 0
      %p134 = por %p132, %p133
      %s135 = ssub.s32 %s28, %s40
      %p136 = scmp.eq.s32.totalorder %s135, 0
      %s138 = sadd.s32 %s137, 1
      %s139 = scalar_select %p136, %s137, %s138
      %p142 = pneg %p136
      %p143 = scmp.eq.s32.totalorder %s21, 3
      %p144 = por %p142, %p143
      %p145 = scmp.ne.s32.totalorder %s137, %s140
      %p146 = scmp.eq.s32.totalorder %s21, 0
      %p147 = por %p145, %p146
      %p148 = scmp.ne.s32.totalorder %s137, %s140
      %p149 = scmp.eq.s32.totalorder %s26, 3
      %p150 = por %p148, %p149
      %p151 = scmp.ne.s32.totalorder %s140, %s141
      %p152 = scmp.eq.s32.totalorder %s26, 0
      %p153 = por %p151, %p152
      %p154 = scmp.ne.s32.totalorder %s140, %s141
      %p155 = scmp.eq.s32.totalorder %s27, 3
      %p156 = por %p154, %p155
      %p158 = scmp.ne.s32.totalorder %s141, %s157
      %p159 = scmp.eq.s32.totalorder %s27, 0
      %p160 = por %p158, %p159
      %s161 = ssub.s32 %s28, %s40
      %p162 = scmp.eq.s32.totalorder %s161, 0
      %s164 = sadd.s32 %s163, 1
      %s165 = scalar_select %p162, %s163, %s164
      %p168 = pneg %p162
      %p169 = scmp.eq.s32.totalorder %s21, 3
      %p170 = por %p168, %p169
      %p171 = scmp.ne.s32.totalorder %s163, %s166
      %p172 = scmp.eq.s32.totalorder %s21, 0
      %p173 = por %p171, %p172
      %p174 = scmp.ne.s32.totalorder %s163, %s166
      %p175 = scmp.eq.s32.totalorder %s26, 3
      %p176 = por %p174, %p175
      %p177 = scmp.ne.s32.totalorder %s166, %s167
      %p178 = scmp.eq.s32.totalorder %s26, 0
      %p179 = por %p177, %p178
      %p180 = scmp.ne.s32.totalorder %s166, %s167
      %p181 = scmp.eq.s32.totalorder %s27, 3
      %p182 = por %p180, %p181
      %p184 = scmp.ne.s32.totalorder %s167, %s183
      %p185 = scmp.eq.s32.totalorder %s27, 0
      %p186 = por %p184, %p185
      %s187 = ssub.s32 %s28, %s40
      %p188 = scmp.eq.s32.totalorder %s187, 0
      %s190 = sadd.s32 %s189, 1
      %s191 = scalar_select %p188, %s189, %s190
      %p194 = pneg %p188
      %p195 = scmp.eq.s32.totalorder %s21, 3
      %p196 = por %p194, %p195
      %p197 = scmp.ne.s32.totalorder %s189, %s192
      %p198 = scmp.eq.s32.totalorder %s21, 0
      %p199 = por %p197, %p198
      %p200 = scmp.ne.s32.totalorder %s189, %s192
      %p201 = scmp.eq.s32.totalorder %s26, 3
      %p202 = por %p200, %p201
      %p203 = scmp.ne.s32.totalorder %s192, %s193
      %p204 = scmp.eq.s32.totalorder %s26, 0
      %p205 = por %p203, %p204
      %p206 = scmp.ne.s32.totalorder %s192, %s193
      %p207 = scmp.eq.s32.totalorder %s27, 3
      %p208 = por %p206, %p207
      %p210 = scmp.ne.s32.totalorder %s193, %s209
      %p211 = scmp.eq.s32.totalorder %s27, 0
      %p212 = por %p210, %p211
      %s214 = sadd.s32 %s213, 1
      %p217 = scmp.eq.s32.totalorder %s21, 3
      %p218 = scmp.ne.s32.totalorder %s213, %s215
      %p219 = scmp.eq.s32.totalorder %s21, 0
      %p220 = por %p218, %p219
      %p221 = scmp.ne.s32.totalorder %s213, %s215
      %p222 = scmp.eq.s32.totalorder %s26, 3
      %p223 = por %p221, %p222
      %p224 = scmp.ne.s32.totalorder %s215, %s216
      %p225 = scmp.eq.s32.totalorder %s26, 0
      %p226 = por %p224, %p225
      %p227 = scmp.ne.s32.totalorder %s215, %s216
      %p228 = scmp.eq.s32.totalorder %s27, 3
      %p229 = por %p227, %p228
      %p231 = scmp.ne.s32.totalorder %s216, %s230
      %p232 = scmp.eq.s32.totalorder %s27, 0
      %p233 = por %p231, %p232
      %s235 = sadd.s32 %s234, 1
      %p238 = scmp.eq.s32.totalorder %s21, 3
      %p239 = scmp.ne.s32.totalorder %s234, %s236
      %p240 = scmp.eq.s32.totalorder %s21, 0
      %p241 = por %p239, %p240
      %p242 = scmp.ne.s32.totalorder %s234, %s236
      %p243 = scmp.eq.s32.totalorder %s26, 3
      %p244 = por %p242, %p243
      %p245 = scmp.ne.s32.totalorder %s236, %s237
      %p246 = scmp.eq.s32.totalorder %s26, 0
      %p247 = por %p245, %p246
      %p248 = scmp.ne.s32.totalorder %s236, %s237
      %p249 = scmp.eq.s32.totalorder %s27, 3
      %p250 = por %p248, %p249
      %p252 = scmp.ne.s32.totalorder %s237, %s251
      %p253 = scmp.eq.s32.totalorder %s27, 0
      %p254 = por %p252, %p253
      %s256 = sadd.s32 %s255, 1
      %p259 = scmp.eq.s32.totalorder %s21, 3
      %p260 = scmp.ne.s32.totalorder %s255, %s257
      %p261 = scmp.eq.s32.totalorder %s21, 0
      %p262 = por %p260, %p261
      %p263 = scmp.ne.s32.totalorder %s255, %s257
      %p264 = scmp.eq.s32.totalorder %s26, 3
      %p265 = por %p263, %p264
      %p266 = scmp.ne.s32.totalorder %s257, %s258
      %p267 = scmp.eq.s32.totalorder %s26, 0
      %p268 = por %p266, %p267
      %p269 = scmp.ne.s32.totalorder %s257, %s258
      %p270 = scmp.eq.s32.totalorder %s27, 3
      %p271 = por %p269, %p270
      %p273 = scmp.ne.s32.totalorder %s258, %s272
      %p274 = scmp.eq.s32.totalorder %s27, 0
      %p275 = por %p273, %p274
      %s277 = sadd.s32 %s276, 1
      %p280 = scmp.eq.s32.totalorder %s21, 3
      %p281 = scmp.ne.s32.totalorder %s276, %s278
      %p282 = scmp.eq.s32.totalorder %s21, 0
      %p283 = por %p281, %p282
      %p284 = scmp.ne.s32.totalorder %s276, %s278
      %p285 = scmp.eq.s32.totalorder %s26, 3
      %p286 = por %p284, %p285
      %p287 = scmp.ne.s32.totalorder %s278, %s279
      %p288 = scmp.eq.s32.totalorder %s26, 0
      %p289 = por %p287, %p288
      %p290 = scmp.ne.s32.totalorder %s278, %s279
      %p291 = scmp.eq.s32.totalorder %s27, 3
      %p292 = por %p290, %p291
      %p294 = scmp.ne.s32.totalorder %s279, %s293
      %p295 = scmp.eq.s32.totalorder %s27, 0
      %p296 = por %p294, %p295
      %s298 = sadd.s32 %s297, 1
      %p301 = scmp.eq.s32.totalorder %s21, 3
      %p302 = scmp.ne.s32.totalorder %s297, %s299
      %p303 = scmp.eq.s32.totalorder %s21, 0
      %p304 = por %p302, %p303
      %p305 = scmp.ne.s32.totalorder %s297, %s299
      %p306 = scmp.eq.s32.totalorder %s26, 3
      %p307 = por %p305, %p306
      %p308 = scmp.ne.s32.totalorder %s299, %s300
      %p309 = scmp.eq.s32.totalorder %s26, 0
      %p310 = por %p308, %p309
      %p311 = scmp.ne.s32.totalorder %s299, %s300
      %p312 = scmp.eq.s32.totalorder %s27, 3
      %p313 = por %p311, %p312
      %p315 = scmp.ne.s32.totalorder %s300, %s314
      %p316 = scmp.eq.s32.totalorder %s27, 0
      %p317 = por %p315, %p316
      %p318 = scmp.le.s32.totalorder 1, %s21
      %p319 = scmp.lt.s32.totalorder %s21, 5
      %p320 = pnand %p318, %p319
      %p321 = pneg %p320
      // Predicated region
      $region9: #{tpu_custom_call.1} parent=5 // pred_check
        _
      $region10: #{tpu_custom_call.1} parent=5 // pred_check_branch
        %323 = sbr.rel (%p320) target = $region12
      $region11: #{tpu_custom_call.1} parent=5 // pred_region
        %s324 = ssub.s32 %s21, 1
        // Predicated region
        $region13: #{tpu_custom_call.1} parent=11 // pred_check
          %p325 = pneg %p54
        $region14: #{tpu_custom_call.1} parent=11 // pred_check_branch
          %327 = sbr.rel (%p325) target = $region16
        $region15: #{tpu_custom_call.1} parent=11 // pred_region
          %s329 = ssub.s32 4096, 4096
          %330 = vsyncadd [#allocation5], %s329
          %s331 = sshll.u32 [#allocation4], 4
          %s332 = int_to_ptr.vmem [resolvable:$true] %s331
          %337 = dma.hbm_to_vmem [thread:$0]  %s0, 4096, %s332, [#allocation5], 64, 64, 4
        $region16: #{tpu_custom_call.1} parent=11 // pred_fallthru
          _
        // Predicated region
        $region17: #{tpu_custom_call.1} parent=11 // pred_check
          %p338 = pneg %p75
        $region18: #{tpu_custom_call.1} parent=11 // pred_check_branch
          %340 = sbr.rel (%p338) target = $region20
        $region19: #{tpu_custom_call.1} parent=11 // pred_region
          %s342 = ssub.s32 16384, 16384
          %343 = vsyncadd [#allocation8], %s342
          %s344 = sshll.u32 [#allocation7], 4
          %s345 = int_to_ptr.vmem [resolvable:$true] %s344
          %350 = dma.hbm_to_vmem [thread:$0]  %s1, 16384, %s345, [#allocation8], 256, 256, 16
        $region20: #{tpu_custom_call.1} parent=11 // pred_fallthru
          _
        // Predicated region
        $region21: #{tpu_custom_call.1} parent=11 // pred_check
          %p351 = pneg %p226
        $region22: #{tpu_custom_call.1} parent=11 // pred_check_branch
          %353 = sbr.rel (%p351) target = $region24
        $region23: #{tpu_custom_call.1} parent=11 // pred_region
          %s355 = ssub.s32 1024, 1024
          %356 = vsyncadd [#allocation8], %s355
          %s357 = sshll.u32 [#allocation12], 4
          %s358 = int_to_ptr.vmem [resolvable:$true] %s357
          %363 = dma.hbm_to_vmem [thread:$0]  %s7, 1024, %s358, [#allocation8], 64, 64, 4
        $region24: #{tpu_custom_call.1} parent=11 // pred_fallthru
          _
        // Predicated region
        $region25: #{tpu_custom_call.1} parent=11 // pred_check
          %p364 = pneg %p247
        $region26: #{tpu_custom_call.1} parent=11 // pred_check_branch
          %366 = sbr.rel (%p364) target = $region28
        $region27: #{tpu_custom_call.1} parent=11 // pred_region
          _
        $region28: #{tpu_custom_call.1} parent=11 // pred_fallthru
          _
        // Predicated region
        $region29: #{tpu_custom_call.1} parent=11 // pred_check
          %p367 = pneg %p268
        $region30: #{tpu_custom_call.1} parent=11 // pred_check_branch
          %369 = sbr.rel (%p367) target = $region32
        $region31: #{tpu_custom_call.1} parent=11 // pred_region
          %s371 = ssub.s32 1024, 1024
          %372 = vsyncadd [#allocation14], %s371
          %s373 = sshll.u32 [#allocation13], 4
          %s374 = int_to_ptr.vmem [resolvable:$true] %s373
          %379 = dma.hbm_to_vmem [thread:$0]  %s9, 1024, %s374, [#allocation14], 64, 64, 4
        $region32: #{tpu_custom_call.1} parent=11 // pred_fallthru
          _
        // Predicated region
        $region33: #{tpu_custom_call.1} parent=11 // pred_check
          %p380 = pneg %p289
        $region34: #{tpu_custom_call.1} parent=11 // pred_check_branch
          %382 = sbr.rel (%p380) target = $region36
        $region35: #{tpu_custom_call.1} parent=11 // pred_region
          _
        $region36: #{tpu_custom_call.1} parent=11 // pred_fallthru
          _
      $region12: #{tpu_custom_call.1} parent=5 // pred_fallthru
        _
      %p383 = scmp.lt.s32.totalorder %s21, 4
      // Predicated region
      $region37: #{tpu_custom_call.1} parent=5 // pred_check
        %p384 = pneg %p383
      $region38: #{tpu_custom_call.1} parent=5 // pred_check_branch
        %386 = sbr.rel (%p384) target = $region40
      $region39: #{tpu_custom_call.1} parent=5 // pred_region
        // Predicated region
        $region41: #{tpu_custom_call.1} parent=39 // pred_check
          %p387 = pneg %p95
        $region42: #{tpu_custom_call.1} parent=39 // pred_check_branch
          %389 = sbr.rel (%p387) target = $region44
        $region43: #{tpu_custom_call.1} parent=39 // pred_region
          %s390 = sand.u32 %s21, 1
          %s391 = scalar_lea.sflag [#allocation5], %s390
          %s392 = sand.u32 %s85, 1
          %s393 = smul.addr %s392, 8
          %s394 = scalar_lea.vmem [#allocation9], %s393
          %s395 = smul.u32 2, %s29
          %s397 = ssub.s32 128, 128
          %398 = vsyncadd %s391, %s397
          %s399 = smul.addr %s395, 64
          %s400 = scalar_lea.hbm %s2, %s399
          %s402 = sshll.u32 %s394, 4
          %s403 = int_to_ptr.vmem [resolvable:$true] %s402
          %405 = dma.hbm_to_vmem [thread:$0]  %s400, 128, %s403, %s391
        $region44: #{tpu_custom_call.1} parent=39 // pred_fallthru
          _
        // Predicated region
        $region45: #{tpu_custom_call.1} parent=39 // pred_check
          %p406 = pneg %p121
        $region46: #{tpu_custom_call.1} parent=39 // pred_check_branch
          %408 = sbr.rel (%p406) target = $region48
        $region47: #{tpu_custom_call.1} parent=39 // pred_region
          %s409 = sand.u32 %s21, 1
          %s410 = scalar_lea.sflag [#allocation5], %s409
          %s411 = sand.u32 %s111, 1
          %s412 = smul.addr %s411, 64
          %s413 = scalar_lea.vmem [#allocation10], %s412
          %s415 = ssub.s32 1024, 1024
          %416 = vsyncadd %s410, %s415
          %s417 = smul.addr %s28, 16
          %s418 = smul.addr %s417, 64
          %s419 = scalar_lea.hbm %s3, %s418
          %s420 = sshll.u32 %s413, 4
          %s421 = int_to_ptr.vmem [resolvable:$true] %s420
          %426 = dma.hbm_to_vmem [thread:$0]  %s419, 1024, %s421, %s410, 64, 64, 4
        $region48: #{tpu_custom_call.1} parent=39 // pred_fallthru
          _
        // Predicated region
        $region49: #{tpu_custom_call.1} parent=39 // pred_check
          %p427 = pneg %p147
        $region50: #{tpu_custom_call.1} parent=39 // pred_check_branch
          %429 = sbr.rel (%p427) target = $region52
        $region51: #{tpu_custom_call.1} parent=39 // pred_region
          %p430 = scmp.lt.s32.totalorder %s28, 1
          %s431 = scalar_select %p430, %s28, 1
          %s432 = scalar_lea.vmem %s4, %s431
        $region52: #{tpu_custom_call.1} parent=39 // pred_fallthru
          _
        // Predicated region
        $region53: #{tpu_custom_call.1} parent=39 // pred_check
          %p433 = pneg %p173
        $region54: #{tpu_custom_call.1} parent=39 // pred_check_branch
          %435 = sbr.rel (%p433) target = $region56
        $region55: #{tpu_custom_call.1} parent=39 // pred_region
          %s436 = sand.u32 %s21, 1
          %s437 = scalar_lea.sflag [#allocation5], %s436
          %s438 = sand.u32 %s163, 1
          %s439 = smul.addr %s438, 64
          %s440 = scalar_lea.vmem [#allocation11], %s439
          %s442 = ssub.s32 1024, 1024
          %443 = vsyncadd %s437, %s442
          %s444 = smul.addr %s28, 16
          %s445 = smul.addr %s444, 64
          %s446 = scalar_lea.hbm %s5, %s445
          %s447 = sshll.u32 %s440, 4
          %s448 = int_to_ptr.vmem [resolvable:$true] %s447
          %453 = dma.hbm_to_vmem [thread:$0]  %s446, 1024, %s448, %s437, 64, 64, 4
        $region56: #{tpu_custom_call.1} parent=39 // pred_fallthru
          _
        // Predicated region
        $region57: #{tpu_custom_call.1} parent=39 // pred_check
          %p454 = pneg %p199
        $region58: #{tpu_custom_call.1} parent=39 // pred_check_branch
          %456 = sbr.rel (%p454) target = $region60
        $region59: #{tpu_custom_call.1} parent=39 // pred_region
          %p457 = scmp.lt.s32.totalorder %s28, 1
          %s458 = scalar_select %p457, %s28, 1
          %s459 = scalar_lea.vmem %s6, %s458
        $region60: #{tpu_custom_call.1} parent=39 // pred_fallthru
          _
      $region40: #{tpu_custom_call.1} parent=5 // pred_fallthru
        _
      %p460 = scmp.le.s32.totalorder 1, %s21
      %p461 = scmp.lt.s32.totalorder %s21, 5
      %p462 = pnand %p460, %p461
      %p463 = pneg %p462
      // Predicated region
      $region61: #{tpu_custom_call.1} parent=5 // pred_check
        _
      $region62: #{tpu_custom_call.1} parent=5 // pred_check_branch
        %465 = sbr.rel (%p462) target = $region64
      $region63: #{tpu_custom_call.1} parent=5 // pred_region
        %s466 = ssub.s32 %s21, 1
        // Predicated region
        $region65: #{tpu_custom_call.1} parent=63 // pred_check
          %p467 = pneg %p54
        $region66: #{tpu_custom_call.1} parent=63 // pred_check_branch
          %469 = sbr.rel (%p467) target = $region68
        $region67: #{tpu_custom_call.1} parent=63 // pred_region
          %470 = dma.done [#allocation5], 4096
        $region68: #{tpu_custom_call.1} parent=63 // pred_fallthru
          _
        // Predicated region
        $region69: #{tpu_custom_call.1} parent=63 // pred_check
          %p471 = pneg %p75
        $region70: #{tpu_custom_call.1} parent=63 // pred_check_branch
          %473 = sbr.rel (%p471) target = $region72
        $region71: #{tpu_custom_call.1} parent=63 // pred_region
          %474 = dma.done [#allocation8], 16384
        $region72: #{tpu_custom_call.1} parent=63 // pred_fallthru
          _
        %s475 = sand.u32 %s26, 1
        %s476 = scalar_lea.sflag [#allocation5], %s475
        %s477 = sand.u32 %s88, 1
        %s478 = smul.addr %s477, 8
        %s479 = scalar_lea.vmem [#allocation9], %s478
        // Predicated region
        $region73: #{tpu_custom_call.1} parent=63 // pred_check
          %p480 = pneg %p101
        $region74: #{tpu_custom_call.1} parent=63 // pred_check_branch
          %482 = sbr.rel (%p480) target = $region76
        $region75: #{tpu_custom_call.1} parent=63 // pred_region
          %483 = dma.done %s476, 128
        $region76: #{tpu_custom_call.1} parent=63 // pred_fallthru
          _
        %s484 = sand.u32 %s26, 1
        %s485 = scalar_lea.sflag [#allocation5], %s484
        %s486 = sand.u32 %s114, 1
        %s487 = smul.addr %s486, 64
        %s488 = scalar_lea.vmem [#allocation10], %s487
        // Predicated region
        $region77: #{tpu_custom_call.1} parent=63 // pred_check
          %p489 = pneg %p127
        $region78: #{tpu_custom_call.1} parent=63 // pred_check_branch
          %491 = sbr.rel (%p489) target = $region80
        $region79: #{tpu_custom_call.1} parent=63 // pred_region
          %492 = dma.done %s485, 1024
        $region80: #{tpu_custom_call.1} parent=63 // pred_fallthru
          _
        %s493 = sand.u32 %s26, 1
        %s494 = scalar_lea.sflag [#allocation5], %s493
        %s495 = sand.u32 %s166, 1
        %s496 = smul.addr %s495, 64
        %s497 = scalar_lea.vmem [#allocation11], %s496
        // Predicated region
        $region81: #{tpu_custom_call.1} parent=63 // pred_check
          %p498 = pneg %p179
        $region82: #{tpu_custom_call.1} parent=63 // pred_check_branch
          %500 = sbr.rel (%p498) target = $region84
        $region83: #{tpu_custom_call.1} parent=63 // pred_region
          %501 = dma.done %s494, 1024
        $region84: #{tpu_custom_call.1} parent=63 // pred_fallthru
          _
        // Predicated region
        $region85: #{tpu_custom_call.1} parent=63 // pred_check
          %p502 = pneg %p226
        $region86: #{tpu_custom_call.1} parent=63 // pred_check_branch
          %504 = sbr.rel (%p502) target = $region88
        $region87: #{tpu_custom_call.1} parent=63 // pred_region
          %505 = dma.done [#allocation8], 1024
        $region88: #{tpu_custom_call.1} parent=63 // pred_fallthru
          _
        // Predicated region
        $region89: #{tpu_custom_call.1} parent=63 // pred_check
          %p506 = pneg %p268
        $region90: #{tpu_custom_call.1} parent=63 // pred_check_branch
          %508 = sbr.rel (%p506) target = $region92
        $region91: #{tpu_custom_call.1} parent=63 // pred_region
          %509 = dma.done [#allocation14], 1024
        $region92: #{tpu_custom_call.1} parent=63 // pred_fallthru
          _
        %p510 = pneg %p54
        %p511 = pneg %p51
        %p512 = pneg %p75
        %p513 = pneg %p72
        %s514 = sand.u32 %s26, 1
        %s515 = scalar_lea.sflag [#allocation5], %s514
        %s516 = sand.u32 %s88, 1
        %s517 = smul.addr %s516, 8
        %s518 = scalar_lea.vmem [#allocation9], %s517
        %p519 = pneg %p101
        %p520 = pneg %p98
        %s521 = sand.u32 %s26, 1
        %s522 = scalar_lea.sflag [#allocation5], %s521
        %s523 = sand.u32 %s114, 1
        %s524 = smul.addr %s523, 64
        %s525 = scalar_lea.vmem [#allocation10], %s524
        %p526 = pneg %p127
        %p527 = pneg %p124
        %p528 = scmp.lt.s32.totalorder %s30, 1
        %s529 = scalar_select %p528, %s30, 1
        %s530 = scalar_lea.vmem %s4, %s529
        %p531 = pneg %p153
        %p532 = pneg %p150
        %s533 = sand.u32 %s26, 1
        %s534 = scalar_lea.sflag [#allocation5], %s533
        %s535 = sand.u32 %s166, 1
        %s536 = smul.addr %s535, 64
        %s537 = scalar_lea.vmem [#allocation11], %s536
        %p538 = pneg %p179
        %p539 = pneg %p176
        %p540 = scmp.lt.s32.totalorder %s30, 1
        %s541 = scalar_select %p540, %s30, 1
        %s542 = scalar_lea.vmem %s6, %s541
        %p543 = pneg %p205
        %p544 = pneg %p202
        %p545 = pneg %p226
        %p546 = pneg %p223
        %p547 = pneg %p247
        %p548 = pneg %p244
        %p549 = pneg %p268
        %p550 = pneg %p265
        %p551 = pneg %p289
        %p552 = pneg %p286
        %p553 = pneg %p310
        %p554 = pneg %p307
        %s555 = smul.u32 2, %s31
        %p556 = scmp.lt.s32.totalorder %s30, 1
        %s557 = scalar_select %p556, %s30, 1
        %s558 = scalar_lea.vmem %s4, %s557
        %p559 = scmp.lt.s32.totalorder %s30, 1
        %s560 = scalar_select %p559, %s30, 1
        %s561 = scalar_lea.vmem %s6, %s560
        %s563 = smul.u32 %s31, 256
        %p564 = scmp.eq.s32.totalorder %s30, 0
        %p565 = scmp.eq.s32.totalorder %s31, 0
        %p566 = pnand %p564, %p565
        %p567 = pneg %p566
        // Predicated region
        $region93: #{tpu_custom_call.1} parent=63 // pred_check
          _
        $region94: #{tpu_custom_call.1} parent=63 // pred_check_branch
          %569 = sbr.rel (%p566) target = $region96
        $region95: #{tpu_custom_call.1} parent=63 // pred_region
          %v570 = vld [vmem:[#allocation4] sm:$0xf]
          %v571 = vld [vmem:[#allocation4 + $0x4] sm:$0xf]
          %v572 = vld [vmem:[#allocation4 + $0x8] sm:$0xf]
          %v573 = vld [vmem:[#allocation4 + $0xc] sm:$0xf]
          %v574 = vld [vmem:[#allocation4 + $0x10] sm:$0xf]
          %v575 = vld [vmem:[#allocation4 + $0x14] sm:$0xf]
          %v576 = vld [vmem:[#allocation4 + $0x18] sm:$0xf]
          %v577 = vld [vmem:[#allocation4 + $0x1c] sm:$0xf]
          %v578 = vld [vmem:[#allocation4 + $0x20] sm:$0xf]
          %v579 = vld [vmem:[#allocation4 + $0x24] sm:$0xf]
          %v580 = vld [vmem:[#allocation4 + $0x28] sm:$0xf]
          %v581 = vld [vmem:[#allocation4 + $0x2c] sm:$0xf]
          %v582 = vld [vmem:[#allocation4 + $0x30] sm:$0xf]
          %v583 = vld [vmem:[#allocation4 + $0x34] sm:$0xf]
          %v584 = vld [vmem:[#allocation4 + $0x38] sm:$0xf]
          %v585 = vld [vmem:[#allocation4 + $0x3c] sm:$0xf]
          %v586 = vld [vmem:[#allocation4 + $0x40] sm:$0xf]
          %v587 = vld [vmem:[#allocation4 + $0x44] sm:$0xf]
          %v588 = vld [vmem:[#allocation4 + $0x48] sm:$0xf]
          %v589 = vld [vmem:[#allocation4 + $0x4c] sm:$0xf]
          %v590 = vld [vmem:[#allocation4 + $0x50] sm:$0xf]
          %v591 = vld [vmem:[#allocation4 + $0x54] sm:$0xf]
          %v592 = vld [vmem:[#allocation4 + $0x58] sm:$0xf]
          %v593 = vld [vmem:[#allocation4 + $0x5c] sm:$0xf]
          %v594 = vld [vmem:[#allocation4 + $0x60] sm:$0xf]
          %v595 = vld [vmem:[#allocation4 + $0x64] sm:$0xf]
          %v596 = vld [vmem:[#allocation4 + $0x68] sm:$0xf]
          %v597 = vld [vmem:[#allocation4 + $0x6c] sm:$0xf]
          %v598 = vld [vmem:[#allocation4 + $0x70] sm:$0xf]
          %v599 = vld [vmem:[#allocation4 + $0x74] sm:$0xf]
          %v600 = vld [vmem:[#allocation4 + $0x78] sm:$0xf]
          %v601 = vld [vmem:[#allocation4 + $0x7c] sm:$0xf]
          %v602 = vld [vmem:[#allocation4 + $0x80] sm:$0xf]
          %v603 = vld [vmem:[#allocation4 + $0x84] sm:$0xf]
          %v604 = vld [vmem:[#allocation4 + $0x88] sm:$0xf]
          %v605 = vld [vmem:[#allocation4 + $0x8c] sm:$0xf]
          %v606 = vld [vmem:[#allocation4 + $0x90] sm:$0xf]
          %v607 = vld [vmem:[#allocation4 + $0x94] sm:$0xf]
          %v608 = vld [vmem:[#allocation4 + $0x98] sm:$0xf]
          %v609 = vld [vmem:[#allocation4 + $0x9c] sm:$0xf]
          %v610 = vld [vmem:[#allocation4 + $0xa0] sm:$0xf]
          %v611 = vld [vmem:[#allocation4 + $0xa4] sm:$0xf]
          %v612 = vld [vmem:[#allocation4 + $0xa8] sm:$0xf]
          %v613 = vld [vmem:[#allocation4 + $0xac] sm:$0xf]
          %v614 = vld [vmem:[#allocation4 + $0xb0] sm:$0xf]
          %v615 = vld [vmem:[#allocation4 + $0xb4] sm:$0xf]
          %v616 = vld [vmem:[#allocation4 + $0xb8] sm:$0xf]
          %v617 = vld [vmem:[#allocation4 + $0xbc] sm:$0xf]
          %v618 = vld [vmem:[#allocation4 + $0xc0] sm:$0xf]
          %v619 = vld [vmem:[#allocation4 + $0xc4] sm:$0xf]
          %v620 = vld [vmem:[#allocation4 + $0xc8] sm:$0xf]
          %v621 = vld [vmem:[#allocation4 + $0xcc] sm:$0xf]
          %v622 = vld [vmem:[#allocation4 + $0xd0] sm:$0xf]
          %v623 = vld [vmem:[#allocation4 + $0xd4] sm:$0xf]
          %v624 = vld [vmem:[#allocation4 + $0xd8] sm:$0xf]
          %v625 = vld [vmem:[#allocation4 + $0xdc] sm:$0xf]
          %v626 = vld [vmem:[#allocation4 + $0xe0] sm:$0xf]
          %v627 = vld [vmem:[#allocation4 + $0xe4] sm:$0xf]
          %v628 = vld [vmem:[#allocation4 + $0xe8] sm:$0xf]
          %v629 = vld [vmem:[#allocation4 + $0xec] sm:$0xf]
          %v630 = vld [vmem:[#allocation4 + $0xf0] sm:$0xf]
          %v631 = vld [vmem:[#allocation4 + $0xf4] sm:$0xf]
          %v632 = vld [vmem:[#allocation4 + $0xf8] sm:$0xf]
          %v633 = vld [vmem:[#allocation4 + $0xfc] sm:$0xf]
          %634 = vst [vmem:[#allocation2] sm:$0xf] %v570
          %635 = vst [vmem:[#allocation2 + $0x4] sm:$0xf] %v571
          %636 = vst [vmem:[#allocation2 + $0x8] sm:$0xf] %v572
          %637 = vst [vmem:[#allocation2 + $0xc] sm:$0xf] %v573
          %638 = vst [vmem:[#allocation2 + $0x10] sm:$0xf] %v574
          %639 = vst [vmem:[#allocation2 + $0x14] sm:$0xf] %v575
          %640 = vst [vmem:[#allocation2 + $0x18] sm:$0xf] %v576
          %641 = vst [vmem:[#allocation2 + $0x1c] sm:$0xf] %v577
          %642 = vst [vmem:[#allocation2 + $0x20] sm:$0xf] %v578
          %643 = vst [vmem:[#allocation2 + $0x24] sm:$0xf] %v579
          %644 = vst [vmem:[#allocation2 + $0x28] sm:$0xf] %v580
          %645 = vst [vmem:[#allocation2 + $0x2c] sm:$0xf] %v581
          %646 = vst [vmem:[#allocation2 + $0x30] sm:$0xf] %v582
          %647 = vst [vmem:[#allocation2 + $0x34] sm:$0xf] %v583
          %648 = vst [vmem:[#allocation2 + $0x38] sm:$0xf] %v584
          %649 = vst [vmem:[#allocation2 + $0x3c] sm:$0xf] %v585
          %650 = vst [vmem:[#allocation2 + $0x40] sm:$0xf] %v586
          %651 = vst [vmem:[#allocation2 + $0x44] sm:$0xf] %v587
          %652 = vst [vmem:[#allocation2 + $0x48] sm:$0xf] %v588
          %653 = vst [vmem:[#allocation2 + $0x4c] sm:$0xf] %v589
          %654 = vst [vmem:[#allocation2 + $0x50] sm:$0xf] %v590
          %655 = vst [vmem:[#allocation2 + $0x54] sm:$0xf] %v591
          %656 = vst [vmem:[#allocation2 + $0x58] sm:$0xf] %v592
          %657 = vst [vmem:[#allocation2 + $0x5c] sm:$0xf] %v593
          %658 = vst [vmem:[#allocation2 + $0x60] sm:$0xf] %v594
          %659 = vst [vmem:[#allocation2 + $0x64] sm:$0xf] %v595
          %660 = vst [vmem:[#allocation2 + $0x68] sm:$0xf] %v596
          %661 = vst [vmem:[#allocation2 + $0x6c] sm:$0xf] %v597
          %662 = vst [vmem:[#allocation2 + $0x70] sm:$0xf] %v598
          %663 = vst [vmem:[#allocation2 + $0x74] sm:$0xf] %v599
          %664 = vst [vmem:[#allocation2 + $0x78] sm:$0xf] %v600
          %665 = vst [vmem:[#allocation2 + $0x7c] sm:$0xf] %v601
          %666 = vst [vmem:[#allocation2 + $0x80] sm:$0xf] %v602
          %667 = vst [vmem:[#allocation2 + $0x84] sm:$0xf] %v603
          %668 = vst [vmem:[#allocation2 + $0x88] sm:$0xf] %v604
          %669 = vst [vmem:[#allocation2 + $0x8c] sm:$0xf] %v605
          %670 = vst [vmem:[#allocation2 + $0x90] sm:$0xf] %v606
          %671 = vst [vmem:[#allocation2 + $0x94] sm:$0xf] %v607
          %672 = vst [vmem:[#allocation2 + $0x98] sm:$0xf] %v608
          %673 = vst [vmem:[#allocation2 + $0x9c] sm:$0xf] %v609
          %674 = vst [vmem:[#allocation2 + $0xa0] sm:$0xf] %v610
          %675 = vst [vmem:[#allocation2 + $0xa4] sm:$0xf] %v611
          %676 = vst [vmem:[#allocation2 + $0xa8] sm:$0xf] %v612
          %677 = vst [vmem:[#allocation2 + $0xac] sm:$0xf] %v613
          %678 = vst [vmem:[#allocation2 + $0xb0] sm:$0xf] %v614
          %679 = vst [vmem:[#allocation2 + $0xb4] sm:$0xf] %v615
          %680 = vst [vmem:[#allocation2 + $0xb8] sm:$0xf] %v616
          %681 = vst [vmem:[#allocation2 + $0xbc] sm:$0xf] %v617
          %682 = vst [vmem:[#allocation2 + $0xc0] sm:$0xf] %v618
          %683 = vst [vmem:[#allocation2 + $0xc4] sm:$0xf] %v619
          %684 = vst [vmem:[#allocation2 + $0xc8] sm:$0xf] %v620
          %685 = vst [vmem:[#allocation2 + $0xcc] sm:$0xf] %v621
          %686 = vst [vmem:[#allocation2 + $0xd0] sm:$0xf] %v622
          %687 = vst [vmem:[#allocation2 + $0xd4] sm:$0xf] %v623
          %688 = vst [vmem:[#allocation2 + $0xd8] sm:$0xf] %v624
          %689 = vst [vmem:[#allocation2 + $0xdc] sm:$0xf] %v625
          %690 = vst [vmem:[#allocation2 + $0xe0] sm:$0xf] %v626
          %691 = vst [vmem:[#allocation2 + $0xe4] sm:$0xf] %v627
          %692 = vst [vmem:[#allocation2 + $0xe8] sm:$0xf] %v628
          %693 = vst [vmem:[#allocation2 + $0xec] sm:$0xf] %v629
          %694 = vst [vmem:[#allocation2 + $0xf0] sm:$0xf] %v630
          %695 = vst [vmem:[#allocation2 + $0xf4] sm:$0xf] %v631
          %696 = vst [vmem:[#allocation2 + $0xf8] sm:$0xf] %v632
          %697 = vst [vmem:[#allocation2 + $0xfc] sm:$0xf] %v633
        $region96: #{tpu_custom_call.1} parent=63 // pred_fallthru
          _
        %s698 = sshra.s32 %s563, 3
        %s699 = sand.u32 %s563, 7
        %s700 = smul.u32 %s698, 4
        %s701 = smul.addr %s700, 4
        %s702 = scalar_lea.vmem [#allocation7], %s701
        %v703 = vld [vmem:[%s702] sm:$0xff]
        %v704 = vld [vmem:[%s702 + $0x8] sm:$0xff]
        %v705 = vld [vmem:[%s702 + $0x10] sm:$0xff]
        %v706 = vld [vmem:[%s702 + $0x18] sm:$0xff]
        %v707 = vld [vmem:[%s702 + $0x20] sm:$0xff]
        %v708 = vld [vmem:[%s702 + $0x28] sm:$0xff]
        %v709 = vld [vmem:[%s702 + $0x30] sm:$0xff]
        %v710 = vld [vmem:[%s702 + $0x38] sm:$0xff]
        %v711 = vld [vmem:[%s702 + $0x40] sm:$0xff]
        %v712 = vld [vmem:[%s702 + $0x48] sm:$0xff]
        %v713 = vld [vmem:[%s702 + $0x50] sm:$0xff]
        %v714 = vld [vmem:[%s702 + $0x58] sm:$0xff]
        %v715 = vld [vmem:[%s702 + $0x60] sm:$0xff]
        %v716 = vld [vmem:[%s702 + $0x68] sm:$0xff]
        %v717 = vld [vmem:[%s702 + $0x70] sm:$0xff]
        %v718 = vld [vmem:[%s702 + $0x78] sm:$0xff]
        %v719 = vld [vmem:[%s702 + $0x80] sm:$0xff]
        %v720 = vld [vmem:[%s702 + $0x88] sm:$0xff]
        %v721 = vld [vmem:[%s702 + $0x90] sm:$0xff]
        %v722 = vld [vmem:[%s702 + $0x98] sm:$0xff]
        %v723 = vld [vmem:[%s702 + $0xa0] sm:$0xff]
        %v724 = vld [vmem:[%s702 + $0xa8] sm:$0xff]
        %v725 = vld [vmem:[%s702 + $0xb0] sm:$0xff]
        %v726 = vld [vmem:[%s702 + $0xb8] sm:$0xff]
        %v727 = vld [vmem:[%s702 + $0xc0] sm:$0xff]
        %v728 = vld [vmem:[%s702 + $0xc8] sm:$0xff]
        %v729 = vld [vmem:[%s702 + $0xd0] sm:$0xff]
        %v730 = vld [vmem:[%s702 + $0xd8] sm:$0xff]
        %v731 = vld [vmem:[%s702 + $0xe0] sm:$0xff]
        %v732 = vld [vmem:[%s702 + $0xe8] sm:$0xff]
        %v733 = vld [vmem:[%s702 + $0xf0] sm:$0xff]
        %v734 = vld [vmem:[%s702 + $0xf8] sm:$0xff]
        %v735 = vld [vmem:[%s702 + $0x100] sm:$0xff]
        %v736 = vld [vmem:[%s702 + $0x108] sm:$0xff]
        %v737 = vld [vmem:[%s702 + $0x110] sm:$0xff]
        %v738 = vld [vmem:[%s702 + $0x118] sm:$0xff]
        %v739 = vld [vmem:[%s702 + $0x120] sm:$0xff]
        %v740 = vld [vmem:[%s702 + $0x128] sm:$0xff]
        %v741 = vld [vmem:[%s702 + $0x130] sm:$0xff]
        %v742 = vld [vmem:[%s702 + $0x138] sm:$0xff]
        %v743 = vld [vmem:[%s702 + $0x140] sm:$0xff]
        %v744 = vld [vmem:[%s702 + $0x148] sm:$0xff]
        %v745 = vld [vmem:[%s702 + $0x150] sm:$0xff]
        %v746 = vld [vmem:[%s702 + $0x158] sm:$0xff]
        %v747 = vld [vmem:[%s702 + $0x160] sm:$0xff]
        %v748 = vld [vmem:[%s702 + $0x168] sm:$0xff]
        %v749 = vld [vmem:[%s702 + $0x170] sm:$0xff]
        %v750 = vld [vmem:[%s702 + $0x178] sm:$0xff]
        %v751 = vld [vmem:[%s702 + $0x180] sm:$0xff]
        %v752 = vld [vmem:[%s702 + $0x188] sm:$0xff]
        %v753 = vld [vmem:[%s702 + $0x190] sm:$0xff]
        %v754 = vld [vmem:[%s702 + $0x198] sm:$0xff]
        %v755 = vld [vmem:[%s702 + $0x1a0] sm:$0xff]
        %v756 = vld [vmem:[%s702 + $0x1a8] sm:$0xff]
        %v757 = vld [vmem:[%s702 + $0x1b0] sm:$0xff]
        %v758 = vld [vmem:[%s702 + $0x1b8] sm:$0xff]
        %v759 = vld [vmem:[%s702 + $0x1c0] sm:$0xff]
        %v760 = vld [vmem:[%s702 + $0x1c8] sm:$0xff]
        %v761 = vld [vmem:[%s702 + $0x1d0] sm:$0xff]
        %v762 = vld [vmem:[%s702 + $0x1d8] sm:$0xff]
        %v763 = vld [vmem:[%s702 + $0x1e0] sm:$0xff]
        %v764 = vld [vmem:[%s702 + $0x1e8] sm:$0xff]
        %v765 = vld [vmem:[%s702 + $0x1f0] sm:$0xff]
        %v766 = vld [vmem:[%s702 + $0x1f8] sm:$0xff]
        %p767 = scmp.lt.s32.totalorder %s30, 0
        %s768 = ssub.s32 0, %s30
        %s769 = scalar_select %p767, %s768, %s30
        %s770 = sand.u32 %s769, 1
        %s771 = ssub.s32 0, %s770
        %s772 = scalar_select %p767, %s771, %s770
        %p773 = scmp.ne.s32.totalorder %s772, 0
        %p774 = scmp.lt.s32.totalorder %s772, 0
        %p775 = pnand %p774, %p773
        %p776 = pneg %p775
        %s777 = sadd.s32 %s772, 2
        %s778 = scalar_select %p776, %s777, %s772
        %s779 = smul.u32 %s778, 64
        %s780 = smul.addr %s779, 4
        %s781 = scalar_lea.vmem [#allocation2], %s780
        %v782 = vld [vmem:[%s781] sm:$0xf]
        %v783 = vld [vmem:[%s781 + $0x4] sm:$0xf]
        %v784 = vld [vmem:[%s781 + $0x8] sm:$0xf]
        %v785 = vld [vmem:[%s781 + $0xc] sm:$0xf]
        %v786 = vld [vmem:[%s781 + $0x10] sm:$0xf]
        %v787 = vld [vmem:[%s781 + $0x14] sm:$0xf]
        %v788 = vld [vmem:[%s781 + $0x18] sm:$0xf]
        %v789 = vld [vmem:[%s781 + $0x1c] sm:$0xf]
        %v790 = vld [vmem:[%s781 + $0x20] sm:$0xf]
        %v791 = vld [vmem:[%s781 + $0x24] sm:$0xf]
        %v792 = vld [vmem:[%s781 + $0x28] sm:$0xf]
        %v793 = vld [vmem:[%s781 + $0x2c] sm:$0xf]
        %v794 = vld [vmem:[%s781 + $0x30] sm:$0xf]
        %v795 = vld [vmem:[%s781 + $0x34] sm:$0xf]
        %v796 = vld [vmem:[%s781 + $0x38] sm:$0xf]
        %v797 = vld [vmem:[%s781 + $0x3c] sm:$0xf]
        %v798 = vld [vmem:[%s781 + $0x40] sm:$0xf]
        %v799 = vld [vmem:[%s781 + $0x44] sm:$0xf]
        %v800 = vld [vmem:[%s781 + $0x48] sm:$0xf]
        %v801 = vld [vmem:[%s781 + $0x4c] sm:$0xf]
        %v802 = vld [vmem:[%s781 + $0x50] sm:$0xf]
        %v803 = vld [vmem:[%s781 + $0x54] sm:$0xf]
        %v804 = vld [vmem:[%s781 + $0x58] sm:$0xf]
        %v805 = vld [vmem:[%s781 + $0x5c] sm:$0xf]
        %v806 = vld [vmem:[%s781 + $0x60] sm:$0xf]
        %v807 = vld [vmem:[%s781 + $0x64] sm:$0xf]
        %v808 = vld [vmem:[%s781 + $0x68] sm:$0xf]
        %v809 = vld [vmem:[%s781 + $0x6c] sm:$0xf]
        %v810 = vld [vmem:[%s781 + $0x70] sm:$0xf]
        %v811 = vld [vmem:[%s781 + $0x74] sm:$0xf]
        %v812 = vld [vmem:[%s781 + $0x78] sm:$0xf]
        %v813 = vld [vmem:[%s781 + $0x7c] sm:$0xf]
        %v814 = vld [vmem:[%s781 + $0x80] sm:$0xf]
        %v815 = vld [vmem:[%s781 + $0x84] sm:$0xf]
        %v816 = vld [vmem:[%s781 + $0x88] sm:$0xf]
        %v817 = vld [vmem:[%s781 + $0x8c] sm:$0xf]
        %v818 = vld [vmem:[%s781 + $0x90] sm:$0xf]
        %v819 = vld [vmem:[%s781 + $0x94] sm:$0xf]
        %v820 = vld [vmem:[%s781 + $0x98] sm:$0xf]
        %v821 = vld [vmem:[%s781 + $0x9c] sm:$0xf]
        %v822 = vld [vmem:[%s781 + $0xa0] sm:$0xf]
        %v823 = vld [vmem:[%s781 + $0xa4] sm:$0xf]
        %v824 = vld [vmem:[%s781 + $0xa8] sm:$0xf]
        %v825 = vld [vmem:[%s781 + $0xac] sm:$0xf]
        %v826 = vld [vmem:[%s781 + $0xb0] sm:$0xf]
        %v827 = vld [vmem:[%s781 + $0xb4] sm:$0xf]
        %v828 = vld [vmem:[%s781 + $0xb8] sm:$0xf]
        %v829 = vld [vmem:[%s781 + $0xbc] sm:$0xf]
        %v830 = vld [vmem:[%s781 + $0xc0] sm:$0xf]
        %v831 = vld [vmem:[%s781 + $0xc4] sm:$0xf]
        %v832 = vld [vmem:[%s781 + $0xc8] sm:$0xf]
        %v833 = vld [vmem:[%s781 + $0xcc] sm:$0xf]
        %v834 = vld [vmem:[%s781 + $0xd0] sm:$0xf]
        %v835 = vld [vmem:[%s781 + $0xd4] sm:$0xf]
        %v836 = vld [vmem:[%s781 + $0xd8] sm:$0xf]
        %v837 = vld [vmem:[%s781 + $0xdc] sm:$0xf]
        %v838 = vld [vmem:[%s781 + $0xe0] sm:$0xf]
        %v839 = vld [vmem:[%s781 + $0xe4] sm:$0xf]
        %v840 = vld [vmem:[%s781 + $0xe8] sm:$0xf]
        %v841 = vld [vmem:[%s781 + $0xec] sm:$0xf]
        %v842 = vld [vmem:[%s781 + $0xf0] sm:$0xf]
        %v843 = vld [vmem:[%s781 + $0xf4] sm:$0xf]
        %v844 = vld [vmem:[%s781 + $0xf8] sm:$0xf]
        %v845 = vld [vmem:[%s781 + $0xfc] sm:$0xf]
        %v910 = vunpack.c.l.b16 %v703
        %v911 = vunpack.c.h.b16 %v703
        %v912 = vunpack.c.l.b16 %v704
        %v913 = vunpack.c.h.b16 %v704
        %v914 = vunpack.c.l.b16 %v705
        %v915 = vunpack.c.h.b16 %v705
        %v916 = vunpack.c.l.b16 %v706
        %v917 = vunpack.c.h.b16 %v706
        %v918 = vunpack.c.l.b16 %v707
        %v919 = vunpack.c.h.b16 %v707
        %v920 = vunpack.c.l.b16 %v708
        %v921 = vunpack.c.h.b16 %v708
        %v922 = vunpack.c.l.b16 %v709
        %v923 = vunpack.c.h.b16 %v709
        %v924 = vunpack.c.l.b16 %v710
        %v925 = vunpack.c.h.b16 %v710
        %v926 = vunpack.c.l.b16 %v711
        %v927 = vunpack.c.h.b16 %v711
        %v928 = vunpack.c.l.b16 %v712
        %v929 = vunpack.c.h.b16 %v712
        %v930 = vunpack.c.l.b16 %v713
        %v931 = vunpack.c.h.b16 %v713
        %v932 = vunpack.c.l.b16 %v714
        %v933 = vunpack.c.h.b16 %v714
        %v934 = vunpack.c.l.b16 %v715
        %v935 = vunpack.c.h.b16 %v715
        %v936 = vunpack.c.l.b16 %v716
        %v937 = vunpack.c.h.b16 %v716
        %v938 = vunpack.c.l.b16 %v717
        %v939 = vunpack.c.h.b16 %v717
        %v940 = vunpack.c.l.b16 %v718
        %v941 = vunpack.c.h.b16 %v718
        %v942 = vunpack.c.l.b16 %v719
        %v943 = vunpack.c.h.b16 %v719
        %v944 = vunpack.c.l.b16 %v720
        %v945 = vunpack.c.h.b16 %v720
        %v946 = vunpack.c.l.b16 %v721
        %v947 = vunpack.c.h.b16 %v721
        %v948 = vunpack.c.l.b16 %v722
        %v949 = vunpack.c.h.b16 %v722
        %v950 = vunpack.c.l.b16 %v723
        %v951 = vunpack.c.h.b16 %v723
        %v952 = vunpack.c.l.b16 %v724
        %v953 = vunpack.c.h.b16 %v724
        %v954 = vunpack.c.l.b16 %v725
        %v955 = vunpack.c.h.b16 %v725
        %v956 = vunpack.c.l.b16 %v726
        %v957 = vunpack.c.h.b16 %v726
        %v958 = vunpack.c.l.b16 %v727
        %v959 = vunpack.c.h.b16 %v727
        %v960 = vunpack.c.l.b16 %v728
        %v961 = vunpack.c.h.b16 %v728
        %v962 = vunpack.c.l.b16 %v729
        %v963 = vunpack.c.h.b16 %v729
        %v964 = vunpack.c.l.b16 %v730
        %v965 = vunpack.c.h.b16 %v730
        %v966 = vunpack.c.l.b16 %v731
        %v967 = vunpack.c.h.b16 %v731
        %v968 = vunpack.c.l.b16 %v732
        %v969 = vunpack.c.h.b16 %v732
        %v970 = vunpack.c.l.b16 %v733
        %v971 = vunpack.c.h.b16 %v733
        %v972 = vunpack.c.l.b16 %v734
        %v973 = vunpack.c.h.b16 %v734
        %v974 = vunpack.c.l.b16 %v735
        %v975 = vunpack.c.h.b16 %v735
        %v976 = vunpack.c.l.b16 %v736
        %v977 = vunpack.c.h.b16 %v736
        %v978 = vunpack.c.l.b16 %v737
        %v979 = vunpack.c.h.b16 %v737
        %v980 = vunpack.c.l.b16 %v738
        %v981 = vunpack.c.h.b16 %v738
        %v982 = vunpack.c.l.b16 %v739
        %v983 = vunpack.c.h.b16 %v739
        %v984 = vunpack.c.l.b16 %v740
        %v985 = vunpack.c.h.b16 %v740
        %v986 = vunpack.c.l.b16 %v741
        %v987 = vunpack.c.h.b16 %v741
        %v988 = vunpack.c.l.b16 %v742
        %v989 = vunpack.c.h.b16 %v742
        %v990 = vunpack.c.l.b16 %v743
        %v991 = vunpack.c.h.b16 %v743
        %v992 = vunpack.c.l.b16 %v744
        %v993 = vunpack.c.h.b16 %v744
        %v994 = vunpack.c.l.b16 %v745
        %v995 = vunpack.c.h.b16 %v745
        %v996 = vunpack.c.l.b16 %v746
        %v997 = vunpack.c.h.b16 %v746
        %v998 = vunpack.c.l.b16 %v747
        %v999 = vunpack.c.h.b16 %v747
        %v1000 = vunpack.c.l.b16 %v748
        %v1001 = vunpack.c.h.b16 %v748
        %v1002 = vunpack.c.l.b16 %v749
        %v1003 = vunpack.c.h.b16 %v749
        %v1004 = vunpack.c.l.b16 %v750
        %v1005 = vunpack.c.h.b16 %v750
        %v1006 = vunpack.c.l.b16 %v751
        %v1007 = vunpack.c.h.b16 %v751
        %v1008 = vunpack.c.l.b16 %v752
        %v1009 = vunpack.c.h.b16 %v752
        %v1010 = vunpack.c.l.b16 %v753
        %v1011 = vunpack.c.h.b16 %v753
        %v1012 = vunpack.c.l.b16 %v754
        %v1013 = vunpack.c.h.b16 %v754
        %v1014 = vunpack.c.l.b16 %v755
        %v1015 = vunpack.c.h.b16 %v755
        %v1016 = vunpack.c.l.b16 %v756
        %v1017 = vunpack.c.h.b16 %v756
        %v1018 = vunpack.c.l.b16 %v757
        %v1019 = vunpack.c.h.b16 %v757
        %v1020 = vunpack.c.l.b16 %v758
        %v1021 = vunpack.c.h.b16 %v758
        %v1022 = vunpack.c.l.b16 %v759
        %v1023 = vunpack.c.h.b16 %v759
        %v1024 = vunpack.c.l.b16 %v760
        %v1025 = vunpack.c.h.b16 %v760
        %v1026 = vunpack.c.l.b16 %v761
        %v1027 = vunpack.c.h.b16 %v761
        %v1028 = vunpack.c.l.b16 %v762
        %v1029 = vunpack.c.h.b16 %v762
        %v1030 = vunpack.c.l.b16 %v763
        %v1031 = vunpack.c.h.b16 %v763
        %v1032 = vunpack.c.l.b16 %v764
        %v1033 = vunpack.c.h.b16 %v764
        %v1034 = vunpack.c.l.b16 %v765
        %v1035 = vunpack.c.h.b16 %v765
        %v1036 = vunpack.c.l.b16 %v766
        %v1037 = vunpack.c.h.b16 %v766
        %v1038 = vpack.c.b16 %v914, %v910
        %v1039 = vpack.c.b16 %v915, %v911
        %v1040 = vpack.c.b16 %v916, %v912
        %v1041 = vpack.c.b16 %v917, %v913
        %v1042 = vpack.c.b16 %v922, %v918
        %v1043 = vpack.c.b16 %v923, %v919
        %v1044 = vpack.c.b16 %v924, %v920
        %v1045 = vpack.c.b16 %v925, %v921
        %v1046 = vpack.c.b16 %v930, %v926
        %v1047 = vpack.c.b16 %v931, %v927
        %v1048 = vpack.c.b16 %v932, %v928
        %v1049 = vpack.c.b16 %v933, %v929
        %v1050 = vpack.c.b16 %v938, %v934
        %v1051 = vpack.c.b16 %v939, %v935
        %v1052 = vpack.c.b16 %v940, %v936
        %v1053 = vpack.c.b16 %v941, %v937
        %v1054 = vpack.c.b16 %v946, %v942
        %v1055 = vpack.c.b16 %v947, %v943
        %v1056 = vpack.c.b16 %v948, %v944
        %v1057 = vpack.c.b16 %v949, %v945
        %v1058 = vpack.c.b16 %v954, %v950
        %v1059 = vpack.c.b16 %v955, %v951
        %v1060 = vpack.c.b16 %v956, %v952
        %v1061 = vpack.c.b16 %v957, %v953
        %v1062 = vpack.c.b16 %v962, %v958
        %v1063 = vpack.c.b16 %v963, %v959
        %v1064 = vpack.c.b16 %v964, %v960
        %v1065 = vpack.c.b16 %v965, %v961
        %v1066 = vpack.c.b16 %v970, %v966
        %v1067 = vpack.c.b16 %v971, %v967
        %v1068 = vpack.c.b16 %v972, %v968
        %v1069 = vpack.c.b16 %v973, %v969
        %v1070 = vpack.c.b16 %v978, %v974
        %v1071 = vpack.c.b16 %v979, %v975
        %v1072 = vpack.c.b16 %v980, %v976
        %v1073 = vpack.c.b16 %v981, %v977
        %v1074 = vpack.c.b16 %v986, %v982
        %v1075 = vpack.c.b16 %v987, %v983
        %v1076 = vpack.c.b16 %v988, %v984
        %v1077 = vpack.c.b16 %v989, %v985
        %v1078 = vpack.c.b16 %v994, %v990
        %v1079 = vpack.c.b16 %v995, %v991
        %v1080 = vpack.c.b16 %v996, %v992
        %v1081 = vpack.c.b16 %v997, %v993
        %v1082 = vpack.c.b16 %v1002, %v998
        %v1083 = vpack.c.b16 %v1003, %v999
        %v1084 = vpack.c.b16 %v1004, %v1000
        %v1085 = vpack.c.b16 %v1005, %v1001
        %v1086 = vpack.c.b16 %v1010, %v1006
        %v1087 = vpack.c.b16 %v1011, %v1007
        %v1088 = vpack.c.b16 %v1012, %v1008
        %v1089 = vpack.c.b16 %v1013, %v1009
        %v1090 = vpack.c.b16 %v1018, %v1014
        %v1091 = vpack.c.b16 %v1019, %v1015
        %v1092 = vpack.c.b16 %v1020, %v1016
        %v1093 = vpack.c.b16 %v1021, %v1017
        %v1094 = vpack.c.b16 %v1026, %v1022
        %v1095 = vpack.c.b16 %v1027, %v1023
        %v1096 = vpack.c.b16 %v1028, %v1024
        %v1097 = vpack.c.b16 %v1029, %v1025
        %v1098 = vpack.c.b16 %v1034, %v1030
        %v1099 = vpack.c.b16 %v1035, %v1031
        %v1100 = vpack.c.b16 %v1036, %v1032
        %v1101 = vpack.c.b16 %v1037, %v1033
        %v1230 = vunpack.c.l.b16 %v782
        %v1231 = vunpack.c.l.b16 %v783
        %v1232 = vunpack.c.l.b16 %v784
        %v1233 = vunpack.c.l.b16 %v785
        %v1234 = vunpack.c.l.b16 %v786
        %v1235 = vunpack.c.l.b16 %v787
        %v1236 = vunpack.c.l.b16 %v788
        %v1237 = vunpack.c.l.b16 %v789
        %v1238 = vunpack.c.l.b16 %v790
        %v1239 = vunpack.c.l.b16 %v791
        %v1240 = vunpack.c.l.b16 %v792
        %v1241 = vunpack.c.l.b16 %v793
        %v1242 = vunpack.c.l.b16 %v794
        %v1243 = vunpack.c.l.b16 %v795
        %v1244 = vunpack.c.l.b16 %v796
        %v1245 = vunpack.c.l.b16 %v797
        %v1246 = vunpack.c.l.b16 %v798
        %v1247 = vunpack.c.l.b16 %v799
        %v1248 = vunpack.c.l.b16 %v800
        %v1249 = vunpack.c.l.b16 %v801
        %v1250 = vunpack.c.l.b16 %v802
        %v1251 = vunpack.c.l.b16 %v803
        %v1252 = vunpack.c.l.b16 %v804
        %v1253 = vunpack.c.l.b16 %v805
        %v1254 = vunpack.c.l.b16 %v806
        %v1255 = vunpack.c.l.b16 %v807
        %v1256 = vunpack.c.l.b16 %v808
        %v1257 = vunpack.c.l.b16 %v809
        %v1258 = vunpack.c.l.b16 %v810
        %v1259 = vunpack.c.l.b16 %v811
        %v1260 = vunpack.c.l.b16 %v812
        %v1261 = vunpack.c.l.b16 %v813
        %v1262 = vunpack.c.l.b16 %v814
        %v1263 = vunpack.c.l.b16 %v815
        %v1264 = vunpack.c.l.b16 %v816
        %v1265 = vunpack.c.l.b16 %v817
        %v1266 = vunpack.c.l.b16 %v818
        %v1267 = vunpack.c.l.b16 %v819
        %v1268 = vunpack.c.l.b16 %v820
        %v1269 = vunpack.c.l.b16 %v821
        %v1270 = vunpack.c.l.b16 %v822
        %v1271 = vunpack.c.l.b16 %v823
        %v1272 = vunpack.c.l.b16 %v824
        %v1273 = vunpack.c.l.b16 %v825
        %v1274 = vunpack.c.l.b16 %v826
        %v1275 = vunpack.c.l.b16 %v827
        %v1276 = vunpack.c.l.b16 %v828
        %v1277 = vunpack.c.l.b16 %v829
        %v1278 = vunpack.c.l.b16 %v830
        %v1279 = vunpack.c.l.b16 %v831
        %v1280 = vunpack.c.l.b16 %v832
        %v1281 = vunpack.c.l.b16 %v833
        %v1282 = vunpack.c.l.b16 %v834
        %v1283 = vunpack.c.l.b16 %v835
        %v1284 = vunpack.c.l.b16 %v836
        %v1285 = vunpack.c.l.b16 %v837
        %v1286 = vunpack.c.l.b16 %v838
        %v1287 = vunpack.c.l.b16 %v839
        %v1288 = vunpack.c.l.b16 %v840
        %v1289 = vunpack.c.l.b16 %v841
        %v1290 = vunpack.c.l.b16 %v842
        %v1291 = vunpack.c.l.b16 %v843
        %v1292 = vunpack.c.l.b16 %v844
        %v1293 = vunpack.c.l.b16 %v845
        %v1294 = vpack.c.b16 %v1231, %v1230
        %v1295 = vpack.c.b16 %v1233, %v1232
        %v1296 = vpack.c.b16 %v1235, %v1234
        %v1297 = vpack.c.b16 %v1237, %v1236
        %v1298 = vpack.c.b16 %v1239, %v1238
        %v1299 = vpack.c.b16 %v1241, %v1240
        %v1300 = vpack.c.b16 %v1243, %v1242
        %v1301 = vpack.c.b16 %v1245, %v1244
        %v1302 = vpack.c.b16 %v1247, %v1246
        %v1303 = vpack.c.b16 %v1249, %v1248
        %v1304 = vpack.c.b16 %v1251, %v1250
        %v1305 = vpack.c.b16 %v1253, %v1252
        %v1306 = vpack.c.b16 %v1255, %v1254
        %v1307 = vpack.c.b16 %v1257, %v1256
        %v1308 = vpack.c.b16 %v1259, %v1258
        %v1309 = vpack.c.b16 %v1261, %v1260
        %v1310 = vpack.c.b16 %v1263, %v1262
        %v1311 = vpack.c.b16 %v1265, %v1264
        %v1312 = vpack.c.b16 %v1267, %v1266
        %v1313 = vpack.c.b16 %v1269, %v1268
        %v1314 = vpack.c.b16 %v1271, %v1270
        %v1315 = vpack.c.b16 %v1273, %v1272
        %v1316 = vpack.c.b16 %v1275, %v1274
        %v1317 = vpack.c.b16 %v1277, %v1276
        %v1318 = vpack.c.b16 %v1279, %v1278
        %v1319 = vpack.c.b16 %v1281, %v1280
        %v1320 = vpack.c.b16 %v1283, %v1282
        %v1321 = vpack.c.b16 %v1285, %v1284
        %v1322 = vpack.c.b16 %v1287, %v1286
        %v1323 = vpack.c.b16 %v1289, %v1288
        %v1324 = vpack.c.b16 %v1291, %v1290
        %v1325 = vpack.c.b16 %v1293, %v1292
        %1358 = vmatprep.subr.bf16.mxu0 0
        %1359 = vmatpush1.bf16.msra.mxu0 %v1301
        %1360 = vmatprep.subr.bf16.mxu0 0
        %1361 = vmatpush1.bf16.msra.mxu0 %v1300
        %1362 = vmatprep.subr.bf16.mxu0 0
        %1363 = vmatpush1.bf16.msra.mxu0 %v1299
        %1364 = vmatprep.subr.bf16.mxu0 0
        %1365 = vmatpush1.bf16.msra.mxu0 %v1298
        %1366 = vmatprep.subr.bf16.mxu0 0
        %1367 = vmatpush1.bf16.msra.mxu0 %v1297
        %1368 = vmatprep.subr.bf16.mxu0 0
        %1369 = vmatpush1.bf16.msra.mxu0 %v1296
        %1370 = vmatprep.subr.bf16.mxu0 0
        %1371 = vmatpush1.bf16.msra.mxu0 %v1295
        %1372 = vmatprep.subr.bf16.mxu0 0
        %1373 = vmatpush1.bf16.msra.mxu0 %v1294
        %1374 = vmatprep.subr.bf16.mxu0 0
        %1375 = vmatpush2.bf16.msra.mxu0 %v1309
        %1376 = vmatprep.subr.bf16.mxu0 0
        %1377 = vmatpush2.bf16.msra.mxu0 %v1308
        %1378 = vmatprep.subr.bf16.mxu0 0
        %1379 = vmatpush2.bf16.msra.mxu0 %v1307
        %1380 = vmatprep.subr.bf16.mxu0 0
        %1381 = vmatpush2.bf16.msra.mxu0 %v1306
        %1382 = vmatprep.subr.bf16.mxu0 0
        %1383 = vmatpush2.bf16.msra.mxu0 %v1305
        %1384 = vmatprep.subr.bf16.mxu0 0
        %1385 = vmatpush2.bf16.msra.mxu0 %v1304
        %1386 = vmatprep.subr.bf16.mxu0 0
        %1387 = vmatpush2.bf16.msra.mxu0 %v1303
        %1388 = vmatprep.subr.bf16.mxu0 0
        %1389 = vmatpush2.bf16.msra.mxu0 %v1302
        %1390 = vmatprep.mubr.bf16.mxu0 %v1039
        %1391 = vmatmul.mubr.bf16.gmra.mxu0 %v1038
        %v1392 = vpop.f32.mrf.mxu0
        %v1393 = vadd.f32 0.0, %v1392
        %v1394 = vpop.f32.mrf.mxu0
        %v1395 = vpop.f32.mrf.mxu0
        %v1396 = vadd.f32 0.0, %v1395
        %v1397 = vpop.f32.mrf.mxu0
        %1398 = vmatprep.mubr.bf16.mxu0 %v1043
        %1399 = vmatmul.mubr.bf16.gmra.mxu0 %v1042
        %v1400 = vpop.f32.mrf.mxu0
        %v1401 = vadd.f32 0.0, %v1400
        %v1402 = vpop.f32.mrf.mxu0
        %v1403 = vpop.f32.mrf.mxu0
        %v1404 = vadd.f32 0.0, %v1403
        %v1405 = vpop.f32.mrf.mxu0
        %1406 = vmatprep.mubr.bf16.mxu0 %v1047
        %1407 = vmatmul.mubr.bf16.gmra.mxu0 %v1046
        %v1408 = vpop.f32.mrf.mxu0
        %v1409 = vadd.f32 0.0, %v1408
        %v1410 = vpop.f32.mrf.mxu0
        %v1411 = vpop.f32.mrf.mxu0
        %v1412 = vadd.f32 0.0, %v1411
        %v1413 = vpop.f32.mrf.mxu0
        %1414 = vmatprep.mubr.bf16.mxu0 %v1051
        %1415 = vmatmul.mubr.bf16.gmra.mxu0 %v1050
        %v1416 = vpop.f32.mrf.mxu0
        %v1417 = vadd.f32 0.0, %v1416
        %v1418 = vpop.f32.mrf.mxu0
        %v1419 = vpop.f32.mrf.mxu0
        %v1420 = vadd.f32 0.0, %v1419
        %v1421 = vpop.f32.mrf.mxu0
        %1422 = vmatprep.mubr.bf16.mxu0 %v1055
        %1423 = vmatmul.mubr.bf16.gmra.mxu0 %v1054
        %v1424 = vpop.f32.mrf.mxu0
        %v1425 = vadd.f32 0.0, %v1424
        %v1426 = vpop.f32.mrf.mxu0
        %v1427 = vpop.f32.mrf.mxu0
        %v1428 = vadd.f32 0.0, %v1427
        %v1429 = vpop.f32.mrf.mxu0
        %1430 = vmatprep.mubr.bf16.mxu0 %v1059
        %1431 = vmatmul.mubr.bf16.gmra.mxu0 %v1058
        %v1432 = vpop.f32.mrf.mxu0
        %v1433 = vadd.f32 0.0, %v1432
        %v1434 = vpop.f32.mrf.mxu0
        %v1435 = vpop.f32.mrf.mxu0
        %v1436 = vadd.f32 0.0, %v1435
        %v1437 = vpop.f32.mrf.mxu0
        %1438 = vmatprep.mubr.bf16.mxu0 %v1063
        %1439 = vmatmul.mubr.bf16.gmra.mxu0 %v1062
        %v1440 = vpop.f32.mrf.mxu0
        %v1441 = vadd.f32 0.0, %v1440
        %v1442 = vpop.f32.mrf.mxu0
        %v1443 = vpop.f32.mrf.mxu0
        %v1444 = vadd.f32 0.0, %v1443
        %v1445 = vpop.f32.mrf.mxu0
        %1446 = vmatprep.mubr.bf16.mxu0 %v1067
        %1447 = vmatmul.mubr.bf16.gmra.mxu0 %v1066
        %v1448 = vpop.f32.mrf.mxu0
        %v1449 = vadd.f32 0.0, %v1448
        %v1450 = vpop.f32.mrf.mxu0
        %v1451 = vpop.f32.mrf.mxu0
        %v1452 = vadd.f32 0.0, %v1451
        %v1453 = vpop.f32.mrf.mxu0
        %1454 = vmatprep.mubr.bf16.mxu0 %v1071
        %1455 = vmatmul.mubr.bf16.gmra.mxu0 %v1070
        %v1456 = vpop.f32.mrf.mxu0
        %v1457 = vadd.f32 0.0, %v1456
        %v1458 = vpop.f32.mrf.mxu0
        %v1459 = vpop.f32.mrf.mxu0
        %v1460 = vadd.f32 0.0, %v1459
        %v1461 = vpop.f32.mrf.mxu0
        %1462 = vmatprep.mubr.bf16.mxu0 %v1075
        %1463 = vmatmul.mubr.bf16.gmra.mxu0 %v1074
        %v1464 = vpop.f32.mrf.mxu0
        %v1465 = vadd.f32 0.0, %v1464
        %v1466 = vpop.f32.mrf.mxu0
        %v1467 = vpop.f32.mrf.mxu0
        %v1468 = vadd.f32 0.0, %v1467
        %v1469 = vpop.f32.mrf.mxu0
        %1470 = vmatprep.mubr.bf16.mxu0 %v1079
        %1471 = vmatmul.mubr.bf16.gmra.mxu0 %v1078
        %v1472 = vpop.f32.mrf.mxu0
        %v1473 = vadd.f32 0.0, %v1472
        %v1474 = vpop.f32.mrf.mxu0
        %v1475 = vpop.f32.mrf.mxu0
        %v1476 = vadd.f32 0.0, %v1475
        %v1477 = vpop.f32.mrf.mxu0
        %1478 = vmatprep.mubr.bf16.mxu0 %v1083
        %1479 = vmatmul.mubr.bf16.gmra.mxu0 %v1082
        %v1480 = vpop.f32.mrf.mxu0
        %v1481 = vadd.f32 0.0, %v1480
        %v1482 = vpop.f32.mrf.mxu0
        %v1483 = vpop.f32.mrf.mxu0
        %v1484 = vadd.f32 0.0, %v1483
        %v1485 = vpop.f32.mrf.mxu0
        %1486 = vmatprep.mubr.bf16.mxu0 %v1087
        %1487 = vmatmul.mubr.bf16.gmra.mxu0 %v1086
        %v1488 = vpop.f32.mrf.mxu0
        %v1489 = vadd.f32 0.0, %v1488
        %v1490 = vpop.f32.mrf.mxu0
        %v1491 = vpop.f32.mrf.mxu0
        %v1492 = vadd.f32 0.0, %v1491
        %v1493 = vpop.f32.mrf.mxu0
        %1494 = vmatprep.mubr.bf16.mxu0 %v1091
        %1495 = vmatmul.mubr.bf16.gmra.mxu0 %v1090
        %v1496 = vpop.f32.mrf.mxu0
        %v1497 = vadd.f32 0.0, %v1496
        %v1498 = vpop.f32.mrf.mxu0
        %v1499 = vpop.f32.mrf.mxu0
        %v1500 = vadd.f32 0.0, %v1499
        %v1501 = vpop.f32.mrf.mxu0
        %1502 = vmatprep.mubr.bf16.mxu0 %v1095
        %1503 = vmatmul.mubr.bf16.gmra.mxu0 %v1094
        %v1504 = vpop.f32.mrf.mxu0
        %v1505 = vadd.f32 0.0, %v1504
        %v1506 = vpop.f32.mrf.mxu0
        %v1507 = vpop.f32.mrf.mxu0
        %v1508 = vadd.f32 0.0, %v1507
        %v1509 = vpop.f32.mrf.mxu0
        %1510 = vmatprep.mubr.bf16.mxu0 %v1099
        %1511 = vmatmul.mubr.bf16.gmra.mxu0 %v1098
        %v1512 = vpop.f32.mrf.mxu0
        %v1513 = vadd.f32 0.0, %v1512
        %v1514 = vpop.f32.mrf.mxu0
        %v1515 = vpop.f32.mrf.mxu0
        %v1516 = vadd.f32 0.0, %v1515
        %v1517 = vpop.f32.mrf.mxu0
        %1518 = vdwg.mxu0
        %1519 = vmatprep.subr.bf16.mxu0 0
        %1520 = vmatpush1.bf16.msra.mxu0 %v1317
        %1521 = vmatprep.subr.bf16.mxu0 0
        %1522 = vmatpush1.bf16.msra.mxu0 %v1316
        %1523 = vmatprep.subr.bf16.mxu0 0
        %1524 = vmatpush1.bf16.msra.mxu0 %v1315
        %1525 = vmatprep.subr.bf16.mxu0 0
        %1526 = vmatpush1.bf16.msra.mxu0 %v1314
        %1527 = vmatprep.subr.bf16.mxu0 0
        %1528 = vmatpush1.bf16.msra.mxu0 %v1313
        %1529 = vmatprep.subr.bf16.mxu0 0
        %1530 = vmatpush1.bf16.msra.mxu0 %v1312
        %1531 = vmatprep.subr.bf16.mxu0 0
        %1532 = vmatpush1.bf16.msra.mxu0 %v1311
        %1533 = vmatprep.subr.bf16.mxu0 0
        %1534 = vmatpush1.bf16.msra.mxu0 %v1310
        %1535 = vmatprep.subr.bf16.mxu0 0
        %1536 = vmatpush2.bf16.msra.mxu0 %v1325
        %1537 = vmatprep.subr.bf16.mxu0 0
        %1538 = vmatpush2.bf16.msra.mxu0 %v1324
        %1539 = vmatprep.subr.bf16.mxu0 0
        %1540 = vmatpush2.bf16.msra.mxu0 %v1323
        %1541 = vmatprep.subr.bf16.mxu0 0
        %1542 = vmatpush2.bf16.msra.mxu0 %v1322
        %1543 = vmatprep.subr.bf16.mxu0 0
        %1544 = vmatpush2.bf16.msra.mxu0 %v1321
        %1545 = vmatprep.subr.bf16.mxu0 0
        %1546 = vmatpush2.bf16.msra.mxu0 %v1320
        %1547 = vmatprep.subr.bf16.mxu0 0
        %1548 = vmatpush2.bf16.msra.mxu0 %v1319
        %1549 = vmatprep.subr.bf16.mxu0 0
        %1550 = vmatpush2.bf16.msra.mxu0 %v1318
        %1551 = vmatprep.mubr.bf16.mxu0 %v1041
        %1552 = vmatmul.mubr.bf16.gmra.mxu0 %v1040
        %v1553 = vpop.f32.mrf.mxu0
        %v1554 = vadd.f32 %v1393, %v1553
        %v1555 = vpop.f32.mrf.mxu0
        %v1556 = vpop.f32.mrf.mxu0
        %v1557 = vadd.f32 %v1396, %v1556
        %v1558 = vpop.f32.mrf.mxu0
        %1559 = vmatprep.mubr.bf16.mxu0 %v1045
        %1560 = vmatmul.mubr.bf16.gmra.mxu0 %v1044
        %v1561 = vpop.f32.mrf.mxu0
        %v1562 = vadd.f32 %v1401, %v1561
        %v1563 = vpop.f32.mrf.mxu0
        %v1564 = vpop.f32.mrf.mxu0
        %v1565 = vadd.f32 %v1404, %v1564
        %v1566 = vpop.f32.mrf.mxu0
        %1567 = vmatprep.mubr.bf16.mxu0 %v1049
        %1568 = vmatmul.mubr.bf16.gmra.mxu0 %v1048
        %v1569 = vpop.f32.mrf.mxu0
        %v1570 = vadd.f32 %v1409, %v1569
        %v1571 = vpop.f32.mrf.mxu0
        %v1572 = vpop.f32.mrf.mxu0
        %v1573 = vadd.f32 %v1412, %v1572
        %v1574 = vpop.f32.mrf.mxu0
        %1575 = vmatprep.mubr.bf16.mxu0 %v1053
        %1576 = vmatmul.mubr.bf16.gmra.mxu0 %v1052
        %v1577 = vpop.f32.mrf.mxu0
        %v1578 = vadd.f32 %v1417, %v1577
        %v1579 = vpop.f32.mrf.mxu0
        %v1580 = vpop.f32.mrf.mxu0
        %v1581 = vadd.f32 %v1420, %v1580
        %v1582 = vpop.f32.mrf.mxu0
        %1583 = vmatprep.mubr.bf16.mxu0 %v1057
        %1584 = vmatmul.mubr.bf16.gmra.mxu0 %v1056
        %v1585 = vpop.f32.mrf.mxu0
        %v1586 = vadd.f32 %v1425, %v1585
        %v1587 = vpop.f32.mrf.mxu0
        %v1588 = vpop.f32.mrf.mxu0
        %v1589 = vadd.f32 %v1428, %v1588
        %v1590 = vpop.f32.mrf.mxu0
        %1591 = vmatprep.mubr.bf16.mxu0 %v1061
        %1592 = vmatmul.mubr.bf16.gmra.mxu0 %v1060
        %v1593 = vpop.f32.mrf.mxu0
        %v1594 = vadd.f32 %v1433, %v1593
        %v1595 = vpop.f32.mrf.mxu0
        %v1596 = vpop.f32.mrf.mxu0
        %v1597 = vadd.f32 %v1436, %v1596
        %v1598 = vpop.f32.mrf.mxu0
        %1599 = vmatprep.mubr.bf16.mxu0 %v1065
        %1600 = vmatmul.mubr.bf16.gmra.mxu0 %v1064
        %v1601 = vpop.f32.mrf.mxu0
        %v1602 = vadd.f32 %v1441, %v1601
        %v1603 = vpop.f32.mrf.mxu0
        %v1604 = vpop.f32.mrf.mxu0
        %v1605 = vadd.f32 %v1444, %v1604
        %v1606 = vpop.f32.mrf.mxu0
        %1607 = vmatprep.mubr.bf16.mxu0 %v1069
        %1608 = vmatmul.mubr.bf16.gmra.mxu0 %v1068
        %v1609 = vpop.f32.mrf.mxu0
        %v1610 = vadd.f32 %v1449, %v1609
        %v1611 = vpop.f32.mrf.mxu0
        %v1612 = vpop.f32.mrf.mxu0
        %v1613 = vadd.f32 %v1452, %v1612
        %v1614 = vpop.f32.mrf.mxu0
        %1615 = vmatprep.mubr.bf16.mxu0 %v1073
        %1616 = vmatmul.mubr.bf16.gmra.mxu0 %v1072
        %v1617 = vpop.f32.mrf.mxu0
        %v1618 = vadd.f32 %v1457, %v1617
        %v1619 = vpop.f32.mrf.mxu0
        %v1620 = vpop.f32.mrf.mxu0
        %v1621 = vadd.f32 %v1460, %v1620
        %v1622 = vpop.f32.mrf.mxu0
        %1623 = vmatprep.mubr.bf16.mxu0 %v1077
        %1624 = vmatmul.mubr.bf16.gmra.mxu0 %v1076
        %v1625 = vpop.f32.mrf.mxu0
        %v1626 = vadd.f32 %v1465, %v1625
        %v1627 = vpop.f32.mrf.mxu0
        %v1628 = vpop.f32.mrf.mxu0
        %v1629 = vadd.f32 %v1468, %v1628
        %v1630 = vpop.f32.mrf.mxu0
        %1631 = vmatprep.mubr.bf16.mxu0 %v1081
        %1632 = vmatmul.mubr.bf16.gmra.mxu0 %v1080
        %v1633 = vpop.f32.mrf.mxu0
        %v1634 = vadd.f32 %v1473, %v1633
        %v1635 = vpop.f32.mrf.mxu0
        %v1636 = vpop.f32.mrf.mxu0
        %v1637 = vadd.f32 %v1476, %v1636
        %v1638 = vpop.f32.mrf.mxu0
        %1639 = vmatprep.mubr.bf16.mxu0 %v1085
        %1640 = vmatmul.mubr.bf16.gmra.mxu0 %v1084
        %v1641 = vpop.f32.mrf.mxu0
        %v1642 = vadd.f32 %v1481, %v1641
        %v1643 = vpop.f32.mrf.mxu0
        %v1644 = vpop.f32.mrf.mxu0
        %v1645 = vadd.f32 %v1484, %v1644
        %v1646 = vpop.f32.mrf.mxu0
        %1647 = vmatprep.mubr.bf16.mxu0 %v1089
        %1648 = vmatmul.mubr.bf16.gmra.mxu0 %v1088
        %v1649 = vpop.f32.mrf.mxu0
        %v1650 = vadd.f32 %v1489, %v1649
        %v1651 = vpop.f32.mrf.mxu0
        %v1652 = vpop.f32.mrf.mxu0
        %v1653 = vadd.f32 %v1492, %v1652
        %v1654 = vpop.f32.mrf.mxu0
        %1655 = vmatprep.mubr.bf16.mxu0 %v1093
        %1656 = vmatmul.mubr.bf16.gmra.mxu0 %v1092
        %v1657 = vpop.f32.mrf.mxu0
        %v1658 = vadd.f32 %v1497, %v1657
        %v1659 = vpop.f32.mrf.mxu0
        %v1660 = vpop.f32.mrf.mxu0
        %v1661 = vadd.f32 %v1500, %v1660
        %v1662 = vpop.f32.mrf.mxu0
        %1663 = vmatprep.mubr.bf16.mxu0 %v1097
        %1664 = vmatmul.mubr.bf16.gmra.mxu0 %v1096
        %v1665 = vpop.f32.mrf.mxu0
        %v1666 = vadd.f32 %v1505, %v1665
        %v1667 = vpop.f32.mrf.mxu0
        %v1668 = vpop.f32.mrf.mxu0
        %v1669 = vadd.f32 %v1508, %v1668
        %v1670 = vpop.f32.mrf.mxu0
        %1671 = vmatprep.mubr.bf16.mxu0 %v1101
        %1672 = vmatmul.mubr.bf16.gmra.mxu0 %v1100
        %v1673 = vpop.f32.mrf.mxu0
        %v1674 = vadd.f32 %v1513, %v1673
        %v1675 = vpop.f32.mrf.mxu0
        %v1676 = vpop.f32.mrf.mxu0
        %v1677 = vadd.f32 %v1516, %v1676
        %v1678 = vpop.f32.mrf.mxu0
        %1679 = vdwg.mxu0
        %v1680 = vpack.c.bf16 %v1557, %v1554
        %v1681 = vpack.c.bf16 %v1565, %v1562
        %v1682 = vpack.c.bf16 %v1573, %v1570
        %v1683 = vpack.c.bf16 %v1581, %v1578
        %v1684 = vpack.c.bf16 %v1589, %v1586
        %v1685 = vpack.c.bf16 %v1597, %v1594
        %v1686 = vpack.c.bf16 %v1605, %v1602
        %v1687 = vpack.c.bf16 %v1613, %v1610
        %v1688 = vpack.c.bf16 %v1621, %v1618
        %v1689 = vpack.c.bf16 %v1629, %v1626
        %v1690 = vpack.c.bf16 %v1637, %v1634
        %v1691 = vpack.c.bf16 %v1645, %v1642
        %v1692 = vpack.c.bf16 %v1653, %v1650
        %v1693 = vpack.c.bf16 %v1661, %v1658
        %v1694 = vpack.c.bf16 %v1669, %v1666
        %v1695 = vpack.c.bf16 %v1677, %v1674
        %v1696 = vld [vmem:[%s488] sm:$0xf]
        %v1697 = vld [vmem:[%s488 + $0x4] sm:$0xf]
        %v1698 = vld [vmem:[%s488 + $0x8] sm:$0xf]
        %v1699 = vld [vmem:[%s488 + $0xc] sm:$0xf]
        %v1700 = vld [vmem:[%s488 + $0x10] sm:$0xf]
        %v1701 = vld [vmem:[%s488 + $0x14] sm:$0xf]
        %v1702 = vld [vmem:[%s488 + $0x18] sm:$0xf]
        %v1703 = vld [vmem:[%s488 + $0x1c] sm:$0xf]
        %v1704 = vld [vmem:[%s488 + $0x20] sm:$0xf]
        %v1705 = vld [vmem:[%s488 + $0x24] sm:$0xf]
        %v1706 = vld [vmem:[%s488 + $0x28] sm:$0xf]
        %v1707 = vld [vmem:[%s488 + $0x2c] sm:$0xf]
        %v1708 = vld [vmem:[%s488 + $0x30] sm:$0xf]
        %v1709 = vld [vmem:[%s488 + $0x34] sm:$0xf]
        %v1710 = vld [vmem:[%s488 + $0x38] sm:$0xf]
        %v1711 = vld [vmem:[%s488 + $0x3c] sm:$0xf]
        %v1712 = vld [vmem:[%s558] sm:$0x1]
        %v1714 = vlaneseq
        %v1715 = vshrl.u32 %v1714, 7
        %v1716 = vsub.s32 0, %v1715
        %v1717 = vrot.slane %v1712, %v1716
        %v1735 = vunpack.c.l.b16 %v1696
        %v1736 = vunpack.c.l.b16 %v1697
        %v1737 = vunpack.c.l.b16 %v1698
        %v1738 = vunpack.c.l.b16 %v1699
        %v1739 = vunpack.c.l.b16 %v1700
        %v1740 = vunpack.c.l.b16 %v1701
        %v1741 = vunpack.c.l.b16 %v1702
        %v1742 = vunpack.c.l.b16 %v1703
        %v1743 = vunpack.c.l.b16 %v1704
        %v1744 = vunpack.c.l.b16 %v1705
        %v1745 = vunpack.c.l.b16 %v1706
        %v1746 = vunpack.c.l.b16 %v1707
        %v1747 = vunpack.c.l.b16 %v1708
        %v1748 = vunpack.c.l.b16 %v1709
        %v1749 = vunpack.c.l.b16 %v1710
        %v1750 = vunpack.c.l.b16 %v1711
        %v1751 = vpack.c.b16 %v1736, %v1735
        %v1752 = vpack.c.b16 %v1738, %v1737
        %v1753 = vpack.c.b16 %v1740, %v1739
        %v1754 = vpack.c.b16 %v1742, %v1741
        %v1755 = vpack.c.b16 %v1744, %v1743
        %v1756 = vpack.c.b16 %v1746, %v1745
        %v1757 = vpack.c.b16 %v1748, %v1747
        %v1758 = vpack.c.b16 %v1750, %v1749
        %1767 = vmatprep.subr.bf16.mxu0 0
        %1768 = vmatpush1.bf16.msra.mxu0 %v1758
        %1769 = vmatprep.subr.bf16.mxu0 0
        %1770 = vmatpush1.bf16.msra.mxu0 %v1757
        %1771 = vmatprep.subr.bf16.mxu0 0
        %1772 = vmatpush1.bf16.msra.mxu0 %v1756
        %1773 = vmatprep.subr.bf16.mxu0 0
        %1774 = vmatpush1.bf16.msra.mxu0 %v1755
        %1775 = vmatprep.subr.bf16.mxu0 0
        %1776 = vmatpush1.bf16.msra.mxu0 %v1754
        %1777 = vmatprep.subr.bf16.mxu0 0
        %1778 = vmatpush1.bf16.msra.mxu0 %v1753
        %1779 = vmatprep.subr.bf16.mxu0 0
        %1780 = vmatpush1.bf16.msra.mxu0 %v1752
        %1781 = vmatprep.subr.bf16.mxu0 0
        %1782 = vmatpush1.bf16.msra.mxu0 %v1751
        %1783 = vmatprep.subr.bf16.mxu0 0
        %1784 = vmatpush2.bf16.msra.mxu0 0
        %1785 = vmatprep.subr.bf16.mxu0 0
        %1786 = vmatpush2.bf16.msra.mxu0 0
        %1787 = vmatprep.subr.bf16.mxu0 0
        %1788 = vmatpush2.bf16.msra.mxu0 0
        %1789 = vmatprep.subr.bf16.mxu0 0
        %1790 = vmatpush2.bf16.msra.mxu0 0
        %1791 = vmatprep.subr.bf16.mxu0 0
        %1792 = vmatpush2.bf16.msra.mxu0 0
        %1793 = vmatprep.subr.bf16.mxu0 0
        %1794 = vmatpush2.bf16.msra.mxu0 0
        %1795 = vmatprep.subr.bf16.mxu0 0
        %1796 = vmatpush2.bf16.msra.mxu0 0
        %1797 = vmatprep.subr.bf16.mxu0 0
        %1798 = vmatpush2.bf16.msra.mxu0 0
        %1799 = vmatprep.mubr.bf16.mxu0 0
        %1800 = vmatmul.mubr.bf16.gmra.mxu0 %v1680
        %v1801 = vpop.f32.mrf.mxu0
        %v1802 = vadd.f32 %v1717, %v1801
        %v1803 = vpop.f32.mrf.mxu0
        %v1804 = vpop.f32.mrf.mxu0
        %v1805 = vadd.f32 %v1717, %v1804
        %v1806 = vpop.f32.mrf.mxu0
        %1807 = vmatprep.mubr.bf16.mxu0 0
        %1808 = vmatmul.mubr.bf16.gmra.mxu0 %v1681
        %v1809 = vpop.f32.mrf.mxu0
        %v1810 = vadd.f32 %v1717, %v1809
        %v1811 = vpop.f32.mrf.mxu0
        %v1812 = vpop.f32.mrf.mxu0
        %v1813 = vadd.f32 %v1717, %v1812
        %v1814 = vpop.f32.mrf.mxu0
        %1815 = vmatprep.mubr.bf16.mxu0 0
        %1816 = vmatmul.mubr.bf16.gmra.mxu0 %v1682
        %v1817 = vpop.f32.mrf.mxu0
        %v1818 = vadd.f32 %v1717, %v1817
        %v1819 = vpop.f32.mrf.mxu0
        %v1820 = vpop.f32.mrf.mxu0
        %v1821 = vadd.f32 %v1717, %v1820
        %v1822 = vpop.f32.mrf.mxu0
        %1823 = vmatprep.mubr.bf16.mxu0 0
        %1824 = vmatmul.mubr.bf16.gmra.mxu0 %v1683
        %v1825 = vpop.f32.mrf.mxu0
        %v1826 = vadd.f32 %v1717, %v1825
        %v1827 = vpop.f32.mrf.mxu0
        %v1828 = vpop.f32.mrf.mxu0
        %v1829 = vadd.f32 %v1717, %v1828
        %v1830 = vpop.f32.mrf.mxu0
        %1831 = vmatprep.mubr.bf16.mxu0 0
        %1832 = vmatmul.mubr.bf16.gmra.mxu0 %v1684
        %v1833 = vpop.f32.mrf.mxu0
        %v1834 = vadd.f32 %v1717, %v1833
        %v1835 = vpop.f32.mrf.mxu0
        %v1836 = vpop.f32.mrf.mxu0
        %v1837 = vadd.f32 %v1717, %v1836
        %v1838 = vpop.f32.mrf.mxu0
        %1839 = vmatprep.mubr.bf16.mxu0 0
        %1840 = vmatmul.mubr.bf16.gmra.mxu0 %v1685
        %v1841 = vpop.f32.mrf.mxu0
        %v1842 = vadd.f32 %v1717, %v1841
        %v1843 = vpop.f32.mrf.mxu0
        %v1844 = vpop.f32.mrf.mxu0
        %v1845 = vadd.f32 %v1717, %v1844
        %v1846 = vpop.f32.mrf.mxu0
        %1847 = vmatprep.mubr.bf16.mxu0 0
        %1848 = vmatmul.mubr.bf16.gmra.mxu0 %v1686
        %v1849 = vpop.f32.mrf.mxu0
        %v1850 = vadd.f32 %v1717, %v1849
        %v1851 = vpop.f32.mrf.mxu0
        %v1852 = vpop.f32.mrf.mxu0
        %v1853 = vadd.f32 %v1717, %v1852
        %v1854 = vpop.f32.mrf.mxu0
        %1855 = vmatprep.mubr.bf16.mxu0 0
        %1856 = vmatmul.mubr.bf16.gmra.mxu0 %v1687
        %v1857 = vpop.f32.mrf.mxu0
        %v1858 = vadd.f32 %v1717, %v1857
        %v1859 = vpop.f32.mrf.mxu0
        %v1860 = vpop.f32.mrf.mxu0
        %v1861 = vadd.f32 %v1717, %v1860
        %v1862 = vpop.f32.mrf.mxu0
        %1863 = vmatprep.mubr.bf16.mxu0 0
        %1864 = vmatmul.mubr.bf16.gmra.mxu0 %v1688
        %v1865 = vpop.f32.mrf.mxu0
        %v1866 = vadd.f32 %v1717, %v1865
        %v1867 = vpop.f32.mrf.mxu0
        %v1868 = vpop.f32.mrf.mxu0
        %v1869 = vadd.f32 %v1717, %v1868
        %v1870 = vpop.f32.mrf.mxu0
        %1871 = vmatprep.mubr.bf16.mxu0 0
        %1872 = vmatmul.mubr.bf16.gmra.mxu0 %v1689
        %v1873 = vpop.f32.mrf.mxu0
        %v1874 = vadd.f32 %v1717, %v1873
        %v1875 = vpop.f32.mrf.mxu0
        %v1876 = vpop.f32.mrf.mxu0
        %v1877 = vadd.f32 %v1717, %v1876
        %v1878 = vpop.f32.mrf.mxu0
        %1879 = vmatprep.mubr.bf16.mxu0 0
        %1880 = vmatmul.mubr.bf16.gmra.mxu0 %v1690
        %v1881 = vpop.f32.mrf.mxu0
        %v1882 = vadd.f32 %v1717, %v1881
        %v1883 = vpop.f32.mrf.mxu0
        %v1884 = vpop.f32.mrf.mxu0
        %v1885 = vadd.f32 %v1717, %v1884
        %v1886 = vpop.f32.mrf.mxu0
        %1887 = vmatprep.mubr.bf16.mxu0 0
        %1888 = vmatmul.mubr.bf16.gmra.mxu0 %v1691
        %v1889 = vpop.f32.mrf.mxu0
        %v1890 = vadd.f32 %v1717, %v1889
        %v1891 = vpop.f32.mrf.mxu0
        %v1892 = vpop.f32.mrf.mxu0
        %v1893 = vadd.f32 %v1717, %v1892
        %v1894 = vpop.f32.mrf.mxu0
        %1895 = vmatprep.mubr.bf16.mxu0 0
        %1896 = vmatmul.mubr.bf16.gmra.mxu0 %v1692
        %v1897 = vpop.f32.mrf.mxu0
        %v1898 = vadd.f32 %v1717, %v1897
        %v1899 = vpop.f32.mrf.mxu0
        %v1900 = vpop.f32.mrf.mxu0
        %v1901 = vadd.f32 %v1717, %v1900
        %v1902 = vpop.f32.mrf.mxu0
        %1903 = vmatprep.mubr.bf16.mxu0 0
        %1904 = vmatmul.mubr.bf16.gmra.mxu0 %v1693
        %v1905 = vpop.f32.mrf.mxu0
        %v1906 = vadd.f32 %v1717, %v1905
        %v1907 = vpop.f32.mrf.mxu0
        %v1908 = vpop.f32.mrf.mxu0
        %v1909 = vadd.f32 %v1717, %v1908
        %v1910 = vpop.f32.mrf.mxu0
        %1911 = vmatprep.mubr.bf16.mxu0 0
        %1912 = vmatmul.mubr.bf16.gmra.mxu0 %v1694
        %v1913 = vpop.f32.mrf.mxu0
        %v1914 = vadd.f32 %v1717, %v1913
        %v1915 = vpop.f32.mrf.mxu0
        %v1916 = vpop.f32.mrf.mxu0
        %v1917 = vadd.f32 %v1717, %v1916
        %v1918 = vpop.f32.mrf.mxu0
        %1919 = vmatprep.mubr.bf16.mxu0 0
        %1920 = vmatmul.mubr.bf16.gmra.mxu0 %v1695
        %v1921 = vpop.f32.mrf.mxu0
        %v1922 = vadd.f32 %v1717, %v1921
        %v1923 = vpop.f32.mrf.mxu0
        %v1924 = vpop.f32.mrf.mxu0
        %v1925 = vadd.f32 %v1717, %v1924
        %v1926 = vpop.f32.mrf.mxu0
        %1927 = vdwg.mxu0
        %v1928 = vmax.f32 %v1802, 0.0
        %v1929 = vmax.f32 %v1805, 0.0
        %v1930 = vmax.f32 %v1810, 0.0
        %v1931 = vmax.f32 %v1813, 0.0
        %v1932 = vmax.f32 %v1818, 0.0
        %v1933 = vmax.f32 %v1821, 0.0
        %v1934 = vmax.f32 %v1826, 0.0
        %v1935 = vmax.f32 %v1829, 0.0
        %v1936 = vmax.f32 %v1834, 0.0
        %v1937 = vmax.f32 %v1837, 0.0
        %v1938 = vmax.f32 %v1842, 0.0
        %v1939 = vmax.f32 %v1845, 0.0
        %v1940 = vmax.f32 %v1850, 0.0
        %v1941 = vmax.f32 %v1853, 0.0
        %v1942 = vmax.f32 %v1858, 0.0
        %v1943 = vmax.f32 %v1861, 0.0
        %v1944 = vmax.f32 %v1866, 0.0
        %v1945 = vmax.f32 %v1869, 0.0
        %v1946 = vmax.f32 %v1874, 0.0
        %v1947 = vmax.f32 %v1877, 0.0
        %v1948 = vmax.f32 %v1882, 0.0
        %v1949 = vmax.f32 %v1885, 0.0
        %v1950 = vmax.f32 %v1890, 0.0
        %v1951 = vmax.f32 %v1893, 0.0
        %v1952 = vmax.f32 %v1898, 0.0
        %v1953 = vmax.f32 %v1901, 0.0
        %v1954 = vmax.f32 %v1906, 0.0
        %v1955 = vmax.f32 %v1909, 0.0
        %v1956 = vmax.f32 %v1914, 0.0
        %v1957 = vmax.f32 %v1917, 0.0
        %v1958 = vmax.f32 %v1922, 0.0
        %v1959 = vmax.f32 %v1925, 0.0
        %v1960 = vpack.c.bf16 %v1929, %v1928
        %v1961 = vpack.c.bf16 %v1931, %v1930
        %v1962 = vpack.c.bf16 %v1933, %v1932
        %v1963 = vpack.c.bf16 %v1935, %v1934
        %v1964 = vpack.c.bf16 %v1937, %v1936
        %v1965 = vpack.c.bf16 %v1939, %v1938
        %v1966 = vpack.c.bf16 %v1941, %v1940
        %v1967 = vpack.c.bf16 %v1943, %v1942
        %v1968 = vpack.c.bf16 %v1945, %v1944
        %v1969 = vpack.c.bf16 %v1947, %v1946
        %v1970 = vpack.c.bf16 %v1949, %v1948
        %v1971 = vpack.c.bf16 %v1951, %v1950
        %v1972 = vpack.c.bf16 %v1953, %v1952
        %v1973 = vpack.c.bf16 %v1955, %v1954
        %v1974 = vpack.c.bf16 %v1957, %v1956
        %v1975 = vpack.c.bf16 %v1959, %v1958
        %v1976 = vld [vmem:[%s497] sm:$0xf]
        %v1977 = vld [vmem:[%s497 + $0x4] sm:$0xf]
        %v1978 = vld [vmem:[%s497 + $0x8] sm:$0xf]
        %v1979 = vld [vmem:[%s497 + $0xc] sm:$0xf]
        %v1980 = vld [vmem:[%s497 + $0x10] sm:$0xf]
        %v1981 = vld [vmem:[%s497 + $0x14] sm:$0xf]
        %v1982 = vld [vmem:[%s497 + $0x18] sm:$0xf]
        %v1983 = vld [vmem:[%s497 + $0x1c] sm:$0xf]
        %v1984 = vld [vmem:[%s497 + $0x20] sm:$0xf]
        %v1985 = vld [vmem:[%s497 + $0x24] sm:$0xf]
        %v1986 = vld [vmem:[%s497 + $0x28] sm:$0xf]
        %v1987 = vld [vmem:[%s497 + $0x2c] sm:$0xf]
        %v1988 = vld [vmem:[%s497 + $0x30] sm:$0xf]
        %v1989 = vld [vmem:[%s497 + $0x34] sm:$0xf]
        %v1990 = vld [vmem:[%s497 + $0x38] sm:$0xf]
        %v1991 = vld [vmem:[%s497 + $0x3c] sm:$0xf]
        %v1992 = vld [vmem:[%s561] sm:$0x1]
        %v1994 = vlaneseq
        %v1995 = vshrl.u32 %v1994, 7
        %v1996 = vsub.s32 0, %v1995
        %v1997 = vrot.slane %v1992, %v1996
        %v2015 = vunpack.c.l.b16 %v1976
        %v2016 = vunpack.c.l.b16 %v1977
        %v2017 = vunpack.c.l.b16 %v1978
        %v2018 = vunpack.c.l.b16 %v1979
        %v2019 = vunpack.c.l.b16 %v1980
        %v2020 = vunpack.c.l.b16 %v1981
        %v2021 = vunpack.c.l.b16 %v1982
        %v2022 = vunpack.c.l.b16 %v1983
        %v2023 = vunpack.c.l.b16 %v1984
        %v2024 = vunpack.c.l.b16 %v1985
        %v2025 = vunpack.c.l.b16 %v1986
        %v2026 = vunpack.c.l.b16 %v1987
        %v2027 = vunpack.c.l.b16 %v1988
        %v2028 = vunpack.c.l.b16 %v1989
        %v2029 = vunpack.c.l.b16 %v1990
        %v2030 = vunpack.c.l.b16 %v1991
        %v2031 = vpack.c.b16 %v2016, %v2015
        %v2032 = vpack.c.b16 %v2018, %v2017
        %v2033 = vpack.c.b16 %v2020, %v2019
        %v2034 = vpack.c.b16 %v2022, %v2021
        %v2035 = vpack.c.b16 %v2024, %v2023
        %v2036 = vpack.c.b16 %v2026, %v2025
        %v2037 = vpack.c.b16 %v2028, %v2027
        %v2038 = vpack.c.b16 %v2030, %v2029
        %2047 = vmatprep.subr.bf16.mxu0 0
        %2048 = vmatpush1.bf16.msra.mxu0 %v2038
        %2049 = vmatprep.subr.bf16.mxu0 0
        %2050 = vmatpush1.bf16.msra.mxu0 %v2037
        %2051 = vmatprep.subr.bf16.mxu0 0
        %2052 = vmatpush1.bf16.msra.mxu0 %v2036
        %2053 = vmatprep.subr.bf16.mxu0 0
        %2054 = vmatpush1.bf16.msra.mxu0 %v2035
        %2055 = vmatprep.subr.bf16.mxu0 0
        %2056 = vmatpush1.bf16.msra.mxu0 %v2034
        %2057 = vmatprep.subr.bf16.mxu0 0
        %2058 = vmatpush1.bf16.msra.mxu0 %v2033
        %2059 = vmatprep.subr.bf16.mxu0 0
        %2060 = vmatpush1.bf16.msra.mxu0 %v2032
        %2061 = vmatprep.subr.bf16.mxu0 0
        %2062 = vmatpush1.bf16.msra.mxu0 %v2031
        %2063 = vmatprep.subr.bf16.mxu0 0
        %2064 = vmatpush2.bf16.msra.mxu0 0
        %2065 = vmatprep.subr.bf16.mxu0 0
        %2066 = vmatpush2.bf16.msra.mxu0 0
        %2067 = vmatprep.subr.bf16.mxu0 0
        %2068 = vmatpush2.bf16.msra.mxu0 0
        %2069 = vmatprep.subr.bf16.mxu0 0
        %2070 = vmatpush2.bf16.msra.mxu0 0
        %2071 = vmatprep.subr.bf16.mxu0 0
        %2072 = vmatpush2.bf16.msra.mxu0 0
        %2073 = vmatprep.subr.bf16.mxu0 0
        %2074 = vmatpush2.bf16.msra.mxu0 0
        %2075 = vmatprep.subr.bf16.mxu0 0
        %2076 = vmatpush2.bf16.msra.mxu0 0
        %2077 = vmatprep.subr.bf16.mxu0 0
        %2078 = vmatpush2.bf16.msra.mxu0 0
        %2079 = vmatprep.mubr.bf16.mxu0 0
        %2080 = vmatmul.mubr.bf16.gmra.mxu0 %v1960
        %v2081 = vpop.f32.mrf.mxu0
        %v2082 = vadd.f32 %v1997, %v2081
        %v2083 = vpop.f32.mrf.mxu0
        %v2084 = vpop.f32.mrf.mxu0
        %v2085 = vadd.f32 %v1997, %v2084
        %v2086 = vpop.f32.mrf.mxu0
        %2087 = vmatprep.mubr.bf16.mxu0 0
        %2088 = vmatmul.mubr.bf16.gmra.mxu0 %v1961
        %v2089 = vpop.f32.mrf.mxu0
        %v2090 = vadd.f32 %v1997, %v2089
        %v2091 = vpop.f32.mrf.mxu0
        %v2092 = vpop.f32.mrf.mxu0
        %v2093 = vadd.f32 %v1997, %v2092
        %v2094 = vpop.f32.mrf.mxu0
        %2095 = vmatprep.mubr.bf16.mxu0 0
        %2096 = vmatmul.mubr.bf16.gmra.mxu0 %v1962
        %v2097 = vpop.f32.mrf.mxu0
        %v2098 = vadd.f32 %v1997, %v2097
        %v2099 = vpop.f32.mrf.mxu0
        %v2100 = vpop.f32.mrf.mxu0
        %v2101 = vadd.f32 %v1997, %v2100
        %v2102 = vpop.f32.mrf.mxu0
        %2103 = vmatprep.mubr.bf16.mxu0 0
        %2104 = vmatmul.mubr.bf16.gmra.mxu0 %v1963
        %v2105 = vpop.f32.mrf.mxu0
        %v2106 = vadd.f32 %v1997, %v2105
        %v2107 = vpop.f32.mrf.mxu0
        %v2108 = vpop.f32.mrf.mxu0
        %v2109 = vadd.f32 %v1997, %v2108
        %v2110 = vpop.f32.mrf.mxu0
        %2111 = vmatprep.mubr.bf16.mxu0 0
        %2112 = vmatmul.mubr.bf16.gmra.mxu0 %v1964
        %v2113 = vpop.f32.mrf.mxu0
        %v2114 = vadd.f32 %v1997, %v2113
        %v2115 = vpop.f32.mrf.mxu0
        %v2116 = vpop.f32.mrf.mxu0
        %v2117 = vadd.f32 %v1997, %v2116
        %v2118 = vpop.f32.mrf.mxu0
        %2119 = vmatprep.mubr.bf16.mxu0 0
        %2120 = vmatmul.mubr.bf16.gmra.mxu0 %v1965
        %v2121 = vpop.f32.mrf.mxu0
        %v2122 = vadd.f32 %v1997, %v2121
        %v2123 = vpop.f32.mrf.mxu0
        %v2124 = vpop.f32.mrf.mxu0
        %v2125 = vadd.f32 %v1997, %v2124
        %v2126 = vpop.f32.mrf.mxu0
        %2127 = vmatprep.mubr.bf16.mxu0 0
        %2128 = vmatmul.mubr.bf16.gmra.mxu0 %v1966
        %v2129 = vpop.f32.mrf.mxu0
        %v2130 = vadd.f32 %v1997, %v2129
        %v2131 = vpop.f32.mrf.mxu0
        %v2132 = vpop.f32.mrf.mxu0
        %v2133 = vadd.f32 %v1997, %v2132
        %v2134 = vpop.f32.mrf.mxu0
        %2135 = vmatprep.mubr.bf16.mxu0 0
        %2136 = vmatmul.mubr.bf16.gmra.mxu0 %v1967
        %v2137 = vpop.f32.mrf.mxu0
        %v2138 = vadd.f32 %v1997, %v2137
        %v2139 = vpop.f32.mrf.mxu0
        %v2140 = vpop.f32.mrf.mxu0
        %v2141 = vadd.f32 %v1997, %v2140
        %v2142 = vpop.f32.mrf.mxu0
        %2143 = vmatprep.mubr.bf16.mxu0 0
        %2144 = vmatmul.mubr.bf16.gmra.mxu0 %v1968
        %v2145 = vpop.f32.mrf.mxu0
        %v2146 = vadd.f32 %v1997, %v2145
        %v2147 = vpop.f32.mrf.mxu0
        %v2148 = vpop.f32.mrf.mxu0
        %v2149 = vadd.f32 %v1997, %v2148
        %v2150 = vpop.f32.mrf.mxu0
        %2151 = vmatprep.mubr.bf16.mxu0 0
        %2152 = vmatmul.mubr.bf16.gmra.mxu0 %v1969
        %v2153 = vpop.f32.mrf.mxu0
        %v2154 = vadd.f32 %v1997, %v2153
        %v2155 = vpop.f32.mrf.mxu0
        %v2156 = vpop.f32.mrf.mxu0
        %v2157 = vadd.f32 %v1997, %v2156
        %v2158 = vpop.f32.mrf.mxu0
        %2159 = vmatprep.mubr.bf16.mxu0 0
        %2160 = vmatmul.mubr.bf16.gmra.mxu0 %v1970
        %v2161 = vpop.f32.mrf.mxu0
        %v2162 = vadd.f32 %v1997, %v2161
        %v2163 = vpop.f32.mrf.mxu0
        %v2164 = vpop.f32.mrf.mxu0
        %v2165 = vadd.f32 %v1997, %v2164
        %v2166 = vpop.f32.mrf.mxu0
        %2167 = vmatprep.mubr.bf16.mxu0 0
        %2168 = vmatmul.mubr.bf16.gmra.mxu0 %v1971
        %v2169 = vpop.f32.mrf.mxu0
        %v2170 = vadd.f32 %v1997, %v2169
        %v2171 = vpop.f32.mrf.mxu0
        %v2172 = vpop.f32.mrf.mxu0
        %v2173 = vadd.f32 %v1997, %v2172
        %v2174 = vpop.f32.mrf.mxu0
        %2175 = vmatprep.mubr.bf16.mxu0 0
        %2176 = vmatmul.mubr.bf16.gmra.mxu0 %v1972
        %v2177 = vpop.f32.mrf.mxu0
        %v2178 = vadd.f32 %v1997, %v2177
        %v2179 = vpop.f32.mrf.mxu0
        %v2180 = vpop.f32.mrf.mxu0
        %v2181 = vadd.f32 %v1997, %v2180
        %v2182 = vpop.f32.mrf.mxu0
        %2183 = vmatprep.mubr.bf16.mxu0 0
        %2184 = vmatmul.mubr.bf16.gmra.mxu0 %v1973
        %v2185 = vpop.f32.mrf.mxu0
        %v2186 = vadd.f32 %v1997, %v2185
        %v2187 = vpop.f32.mrf.mxu0
        %v2188 = vpop.f32.mrf.mxu0
        %v2189 = vadd.f32 %v1997, %v2188
        %v2190 = vpop.f32.mrf.mxu0
        %2191 = vmatprep.mubr.bf16.mxu0 0
        %2192 = vmatmul.mubr.bf16.gmra.mxu0 %v1974
        %v2193 = vpop.f32.mrf.mxu0
        %v2194 = vadd.f32 %v1997, %v2193
        %v2195 = vpop.f32.mrf.mxu0
        %v2196 = vpop.f32.mrf.mxu0
        %v2197 = vadd.f32 %v1997, %v2196
        %v2198 = vpop.f32.mrf.mxu0
        %2199 = vmatprep.mubr.bf16.mxu0 0
        %2200 = vmatmul.mubr.bf16.gmra.mxu0 %v1975
        %v2201 = vpop.f32.mrf.mxu0
        %v2202 = vadd.f32 %v1997, %v2201
        %v2203 = vpop.f32.mrf.mxu0
        %v2204 = vpop.f32.mrf.mxu0
        %v2205 = vadd.f32 %v1997, %v2204
        %v2206 = vpop.f32.mrf.mxu0
        %2207 = vdwg.mxu0
        %v2208 = vmax.f32 %v2082, 0.0
        %v2209 = vmax.f32 %v2085, 0.0
        %v2210 = vmax.f32 %v2090, 0.0
        %v2211 = vmax.f32 %v2093, 0.0
        %v2212 = vmax.f32 %v2098, 0.0
        %v2213 = vmax.f32 %v2101, 0.0
        %v2214 = vmax.f32 %v2106, 0.0
        %v2215 = vmax.f32 %v2109, 0.0
        %v2216 = vmax.f32 %v2114, 0.0
        %v2217 = vmax.f32 %v2117, 0.0
        %v2218 = vmax.f32 %v2122, 0.0
        %v2219 = vmax.f32 %v2125, 0.0
        %v2220 = vmax.f32 %v2130, 0.0
        %v2221 = vmax.f32 %v2133, 0.0
        %v2222 = vmax.f32 %v2138, 0.0
        %v2223 = vmax.f32 %v2141, 0.0
        %v2224 = vmax.f32 %v2146, 0.0
        %v2225 = vmax.f32 %v2149, 0.0
        %v2226 = vmax.f32 %v2154, 0.0
        %v2227 = vmax.f32 %v2157, 0.0
        %v2228 = vmax.f32 %v2162, 0.0
        %v2229 = vmax.f32 %v2165, 0.0
        %v2230 = vmax.f32 %v2170, 0.0
        %v2231 = vmax.f32 %v2173, 0.0
        %v2232 = vmax.f32 %v2178, 0.0
        %v2233 = vmax.f32 %v2181, 0.0
        %v2234 = vmax.f32 %v2186, 0.0
        %v2235 = vmax.f32 %v2189, 0.0
        %v2236 = vmax.f32 %v2194, 0.0
        %v2237 = vmax.f32 %v2197, 0.0
        %v2238 = vmax.f32 %v2202, 0.0
        %v2239 = vmax.f32 %v2205, 0.0
        %v2240 = vpack.c.bf16 %v2209, %v2208
        %v2241 = vpack.c.bf16 %v2211, %v2210
        %v2242 = vpack.c.bf16 %v2213, %v2212
        %v2243 = vpack.c.bf16 %v2215, %v2214
        %v2244 = vpack.c.bf16 %v2217, %v2216
        %v2245 = vpack.c.bf16 %v2219, %v2218
        %v2246 = vpack.c.bf16 %v2221, %v2220
        %v2247 = vpack.c.bf16 %v2223, %v2222
        %v2248 = vpack.c.bf16 %v2225, %v2224
        %v2249 = vpack.c.bf16 %v2227, %v2226
        %v2250 = vpack.c.bf16 %v2229, %v2228
        %v2251 = vpack.c.bf16 %v2231, %v2230
        %v2252 = vpack.c.bf16 %v2233, %v2232
        %v2253 = vpack.c.bf16 %v2235, %v2234
        %v2254 = vpack.c.bf16 %v2237, %v2236
        %v2255 = vpack.c.bf16 %v2239, %v2238
        %p2256 = scmp.eq.s32.totalorder %s30, 1
        %p2257 = scmp.ne.s32.totalorder %s30, 1
        // Predicated region
        $region97: #{tpu_custom_call.1} parent=63 // pred_check
          %p2258 = pneg %p2257
        $region98: #{tpu_custom_call.1} parent=63 // pred_check_branch
          %2260 = sbr.rel (%p2258) target = $region100
        $region99: #{tpu_custom_call.1} parent=63 // pred_region
          %s2261 = sadd.s32 %s30, 1
          %p2262 = scmp.lt.s32.totalorder %s2261, 0
          %s2263 = ssub.s32 0, %s2261
          %s2264 = scalar_select %p2262, %s2263, %s2261
          %s2265 = sand.u32 %s2264, 1
          %s2266 = ssub.s32 0, %s2265
          %s2267 = scalar_select %p2262, %s2266, %s2265
          %p2268 = scmp.ne.s32.totalorder %s2267, 0
          %p2269 = scmp.lt.s32.totalorder %s2267, 0
          %p2270 = pnand %p2269, %p2268
          %p2271 = pneg %p2270
          %s2272 = sadd.s32 %s2267, 2
          %s2273 = scalar_select %p2271, %s2272, %s2267
          %v2290 = vunpack.c.l.b16 %v2240
          %v2291 = vunpack.c.h.b16 %v2240
          %v2292 = vunpack.c.l.b16 %v2241
          %v2293 = vunpack.c.h.b16 %v2241
          %v2294 = vunpack.c.l.b16 %v2242
          %v2295 = vunpack.c.h.b16 %v2242
          %v2296 = vunpack.c.l.b16 %v2243
          %v2297 = vunpack.c.h.b16 %v2243
          %v2298 = vunpack.c.l.b16 %v2244
          %v2299 = vunpack.c.h.b16 %v2244
          %v2300 = vunpack.c.l.b16 %v2245
          %v2301 = vunpack.c.h.b16 %v2245
          %v2302 = vunpack.c.l.b16 %v2246
          %v2303 = vunpack.c.h.b16 %v2246
          %v2304 = vunpack.c.l.b16 %v2247
          %v2305 = vunpack.c.h.b16 %v2247
          %v2306 = vunpack.c.l.b16 %v2248
          %v2307 = vunpack.c.h.b16 %v2248
          %v2308 = vunpack.c.l.b16 %v2249
          %v2309 = vunpack.c.h.b16 %v2249
          %v2310 = vunpack.c.l.b16 %v2250
          %v2311 = vunpack.c.h.b16 %v2250
          %v2312 = vunpack.c.l.b16 %v2251
          %v2313 = vunpack.c.h.b16 %v2251
          %v2314 = vunpack.c.l.b16 %v2252
          %v2315 = vunpack.c.h.b16 %v2252
          %v2316 = vunpack.c.l.b16 %v2253
          %v2317 = vunpack.c.h.b16 %v2253
          %v2318 = vunpack.c.l.b16 %v2254
          %v2319 = vunpack.c.h.b16 %v2254
          %v2320 = vunpack.c.l.b16 %v2255
          %v2321 = vunpack.c.h.b16 %v2255
          %v2322 = vpack.c.b16 %v2290, %v2290
          %v2323 = vpack.c.b16 %v2291, %v2291
          %v2324 = vpack.c.b16 %v2292, %v2292
          %v2325 = vpack.c.b16 %v2293, %v2293
          %v2326 = vpack.c.b16 %v2294, %v2294
          %v2327 = vpack.c.b16 %v2295, %v2295
          %v2328 = vpack.c.b16 %v2296, %v2296
          %v2329 = vpack.c.b16 %v2297, %v2297
          %v2330 = vpack.c.b16 %v2298, %v2298
          %v2331 = vpack.c.b16 %v2299, %v2299
          %v2332 = vpack.c.b16 %v2300, %v2300
          %v2333 = vpack.c.b16 %v2301, %v2301
          %v2334 = vpack.c.b16 %v2302, %v2302
          %v2335 = vpack.c.b16 %v2303, %v2303
          %v2336 = vpack.c.b16 %v2304, %v2304
          %v2337 = vpack.c.b16 %v2305, %v2305
          %v2338 = vpack.c.b16 %v2306, %v2306
          %v2339 = vpack.c.b16 %v2307, %v2307
          %v2340 = vpack.c.b16 %v2308, %v2308
          %v2341 = vpack.c.b16 %v2309, %v2309
          %v2342 = vpack.c.b16 %v2310, %v2310
          %v2343 = vpack.c.b16 %v2311, %v2311
          %v2344 = vpack.c.b16 %v2312, %v2312
          %v2345 = vpack.c.b16 %v2313, %v2313
          %v2346 = vpack.c.b16 %v2314, %v2314
          %v2347 = vpack.c.b16 %v2315, %v2315
          %v2348 = vpack.c.b16 %v2316, %v2316
          %v2349 = vpack.c.b16 %v2317, %v2317
          %v2350 = vpack.c.b16 %v2318, %v2318
          %v2351 = vpack.c.b16 %v2319, %v2319
          %v2352 = vpack.c.b16 %v2320, %v2320
          %v2353 = vpack.c.b16 %v2321, %v2321
          %s2386 = smul.u32 %s2273, 64
          %s2387 = sadd.s32 %s698, %s2386
          %s2388 = smul.addr %s2387, 4
          %s2389 = scalar_lea.vmem [#allocation2], %s2388
          %2390 = vst [vmem:[%s2389] sm:$0xf] %v2322
          %2391 = vst [vmem:[%s2389 + $0x4] sm:$0xf] %v2323
          %2392 = vst [vmem:[%s2389 + $0x8] sm:$0xf] %v2324
          %2393 = vst [vmem:[%s2389 + $0xc] sm:$0xf] %v2325
          %2394 = vst [vmem:[%s2389 + $0x10] sm:$0xf] %v2326
          %2395 = vst [vmem:[%s2389 + $0x14] sm:$0xf] %v2327
          %2396 = vst [vmem:[%s2389 + $0x18] sm:$0xf] %v2328
          %2397 = vst [vmem:[%s2389 + $0x1c] sm:$0xf] %v2329
          %2398 = vst [vmem:[%s2389 + $0x20] sm:$0xf] %v2330
          %2399 = vst [vmem:[%s2389 + $0x24] sm:$0xf] %v2331
          %2400 = vst [vmem:[%s2389 + $0x28] sm:$0xf] %v2332
          %2401 = vst [vmem:[%s2389 + $0x2c] sm:$0xf] %v2333
          %2402 = vst [vmem:[%s2389 + $0x30] sm:$0xf] %v2334
          %2403 = vst [vmem:[%s2389 + $0x34] sm:$0xf] %v2335
          %2404 = vst [vmem:[%s2389 + $0x38] sm:$0xf] %v2336
          %2405 = vst [vmem:[%s2389 + $0x3c] sm:$0xf] %v2337
          %2406 = vst [vmem:[%s2389 + $0x40] sm:$0xf] %v2338
          %2407 = vst [vmem:[%s2389 + $0x44] sm:$0xf] %v2339
          %2408 = vst [vmem:[%s2389 + $0x48] sm:$0xf] %v2340
          %2409 = vst [vmem:[%s2389 + $0x4c] sm:$0xf] %v2341
          %2410 = vst [vmem:[%s2389 + $0x50] sm:$0xf] %v2342
          %2411 = vst [vmem:[%s2389 + $0x54] sm:$0xf] %v2343
          %2412 = vst [vmem:[%s2389 + $0x58] sm:$0xf] %v2344
          %2413 = vst [vmem:[%s2389 + $0x5c] sm:$0xf] %v2345
          %2414 = vst [vmem:[%s2389 + $0x60] sm:$0xf] %v2346
          %2415 = vst [vmem:[%s2389 + $0x64] sm:$0xf] %v2347
          %2416 = vst [vmem:[%s2389 + $0x68] sm:$0xf] %v2348
          %2417 = vst [vmem:[%s2389 + $0x6c] sm:$0xf] %v2349
          %2418 = vst [vmem:[%s2389 + $0x70] sm:$0xf] %v2350
          %2419 = vst [vmem:[%s2389 + $0x74] sm:$0xf] %v2351
          %2420 = vst [vmem:[%s2389 + $0x78] sm:$0xf] %v2352
          %2421 = vst [vmem:[%s2389 + $0x7c] sm:$0xf] %v2353
        $region100: #{tpu_custom_call.1} parent=63 // pred_fallthru
          _
        // Predicated region
        $region101: #{tpu_custom_call.1} parent=63 // pred_check
          %p2422 = pneg %p2256
        $region102: #{tpu_custom_call.1} parent=63 // pred_check_branch
          %2424 = sbr.rel (%p2422) target = $region104
        $region103: #{tpu_custom_call.1} parent=63 // pred_region
          // Predicated region
          $region105: #{tpu_custom_call.1} parent=103 // pred_check
            %p2425 = pneg %p565
          $region106: #{tpu_custom_call.1} parent=103 // pred_check_branch
            %2427 = sbr.rel (%p2425) target = $region108
          $region107: #{tpu_custom_call.1} parent=103 // pred_region
            %2428 = vst [vmem:[#allocation3] sm:$0xff] 0.0
          $region108: #{tpu_custom_call.1} parent=103 // pred_fallthru
            _
          %v2429 = vld [vmem:[#allocation3] sm:$0xff]
          %v2430 = vld [vmem:[%s479] sm:$0xff]
          %v2432 = vunpack.c.l.b16 %v2430
          %v2433 = vunpack.c.h.b16 %v2430
          %v2434 = vpack.c.b16 %v2432, %v2432
          %v2435 = vpack.c.b16 %v2433, %v2433
          %2438 = vmatprep.subr.bf16.mxu0 0
          %2439 = vmatpush1.bf16.msra.mxu0 %v2247
          %2440 = vmatprep.subr.bf16.mxu0 0
          %2441 = vmatpush1.bf16.msra.mxu0 %v2246
          %2442 = vmatprep.subr.bf16.mxu0 0
          %2443 = vmatpush1.bf16.msra.mxu0 %v2245
          %2444 = vmatprep.subr.bf16.mxu0 0
          %2445 = vmatpush1.bf16.msra.mxu0 %v2244
          %2446 = vmatprep.subr.bf16.mxu0 0
          %2447 = vmatpush1.bf16.msra.mxu0 %v2243
          %2448 = vmatprep.subr.bf16.mxu0 0
          %2449 = vmatpush1.bf16.msra.mxu0 %v2242
          %2450 = vmatprep.subr.bf16.mxu0 0
          %2451 = vmatpush1.bf16.msra.mxu0 %v2241
          %2452 = vmatprep.subr.bf16.mxu0 0
          %2453 = vmatpush1.bf16.msra.mxu0 %v2240
          %2454 = vmatprep.subr.bf16.mxu0 0
          %2455 = vmatpush2.bf16.msra.mxu0 %v2255
          %2456 = vmatprep.subr.bf16.mxu0 0
          %2457 = vmatpush2.bf16.msra.mxu0 %v2254
          %2458 = vmatprep.subr.bf16.mxu0 0
          %2459 = vmatpush2.bf16.msra.mxu0 %v2253
          %2460 = vmatprep.subr.bf16.mxu0 0
          %2461 = vmatpush2.bf16.msra.mxu0 %v2252
          %2462 = vmatprep.subr.bf16.mxu0 0
          %2463 = vmatpush2.bf16.msra.mxu0 %v2251
          %2464 = vmatprep.subr.bf16.mxu0 0
          %2465 = vmatpush2.bf16.msra.mxu0 %v2250
          %2466 = vmatprep.subr.bf16.mxu0 0
          %2467 = vmatpush2.bf16.msra.mxu0 %v2249
          %2468 = vmatprep.subr.bf16.mxu0 0
          %2469 = vmatpush2.bf16.msra.mxu0 %v2248
          %2470 = vmatprep.mubr.bf16.mxu0 %v2435
          %2471 = vmatmul.mubr.bf16.gmra.mxu0 %v2434
          %v2472 = vpop.f32.mrf.mxu0
          %v2473 = vadd.f32 0.0, %v2472
          %v2474 = vpop.f32.mrf.mxu0
          %v2475 = vpop.f32.mrf.mxu0
          %v2476 = vpop.f32.mrf.mxu0
          %2477 = vdwg.mxu0
          %v2478 = vadd.f32 %v2429, %v2473
          %2479 = vst [vmem:[#allocation3] sm:$0xff] %v2478
          %p2480 = scmp.eq.s32.totalorder %s31, 1
          // Predicated region
          $region109: #{tpu_custom_call.1} parent=103 // pred_check
            %p2481 = pneg %p2480
          $region110: #{tpu_custom_call.1} parent=103 // pred_check_branch
            %2483 = sbr.rel (%p2481) target = $region112
          $region111: #{tpu_custom_call.1} parent=103 // pred_region
            %v2484 = vld [vmem:[#allocation3] sm:$0xff]
            %v2485 = vpack.c.bf16 %v2484, %v2484
            %v2486 = vld [vmem:[#allocation12] sm:$0xf]
            %v2487 = vld [vmem:[#allocation12 + $0x4] sm:$0xf]
            %v2488 = vld [vmem:[#allocation12 + $0x8] sm:$0xf]
            %v2489 = vld [vmem:[#allocation12 + $0xc] sm:$0xf]
            %v2490 = vld [vmem:[#allocation12 + $0x10] sm:$0xf]
            %v2491 = vld [vmem:[#allocation12 + $0x14] sm:$0xf]
            %v2492 = vld [vmem:[#allocation12 + $0x18] sm:$0xf]
            %v2493 = vld [vmem:[#allocation12 + $0x1c] sm:$0xf]
            %v2494 = vld [vmem:[#allocation12 + $0x20] sm:$0xf]
            %v2495 = vld [vmem:[#allocation12 + $0x24] sm:$0xf]
            %v2496 = vld [vmem:[#allocation12 + $0x28] sm:$0xf]
            %v2497 = vld [vmem:[#allocation12 + $0x2c] sm:$0xf]
            %v2498 = vld [vmem:[#allocation12 + $0x30] sm:$0xf]
            %v2499 = vld [vmem:[#allocation12 + $0x34] sm:$0xf]
            %v2500 = vld [vmem:[#allocation12 + $0x38] sm:$0xf]
            %v2501 = vld [vmem:[#allocation12 + $0x3c] sm:$0xf]
            %v2502 = vld [vmem:[%s8] sm:$0x1]
            %v2504 = vlaneseq
            %v2505 = vshrl.u32 %v2504, 7
            %v2506 = vsub.s32 0, %v2505
            %v2507 = vrot.slane %v2502, %v2506
            %v2525 = vunpack.c.l.b16 %v2486
            %v2526 = vunpack.c.l.b16 %v2487
            %v2527 = vunpack.c.l.b16 %v2488
            %v2528 = vunpack.c.l.b16 %v2489
            %v2529 = vunpack.c.l.b16 %v2490
            %v2530 = vunpack.c.l.b16 %v2491
            %v2531 = vunpack.c.l.b16 %v2492
            %v2532 = vunpack.c.l.b16 %v2493
            %v2533 = vunpack.c.l.b16 %v2494
            %v2534 = vunpack.c.l.b16 %v2495
            %v2535 = vunpack.c.l.b16 %v2496
            %v2536 = vunpack.c.l.b16 %v2497
            %v2537 = vunpack.c.l.b16 %v2498
            %v2538 = vunpack.c.l.b16 %v2499
            %v2539 = vunpack.c.l.b16 %v2500
            %v2540 = vunpack.c.l.b16 %v2501
            %v2541 = vpack.c.b16 %v2526, %v2525
            %v2542 = vpack.c.b16 %v2528, %v2527
            %v2543 = vpack.c.b16 %v2530, %v2529
            %v2544 = vpack.c.b16 %v2532, %v2531
            %v2545 = vpack.c.b16 %v2534, %v2533
            %v2546 = vpack.c.b16 %v2536, %v2535
            %v2547 = vpack.c.b16 %v2538, %v2537
            %v2548 = vpack.c.b16 %v2540, %v2539
            %2557 = vmatprep.subr.bf16.mxu0 0
            %2558 = vmatpush1.bf16.msra.mxu0 %v2548
            %2559 = vmatprep.subr.bf16.mxu0 0
            %2560 = vmatpush1.bf16.msra.mxu0 %v2547
            %2561 = vmatprep.subr.bf16.mxu0 0
            %2562 = vmatpush1.bf16.msra.mxu0 %v2546
            %2563 = vmatprep.subr.bf16.mxu0 0
            %2564 = vmatpush1.bf16.msra.mxu0 %v2545
            %2565 = vmatprep.subr.bf16.mxu0 0
            %2566 = vmatpush1.bf16.msra.mxu0 %v2544
            %2567 = vmatprep.subr.bf16.mxu0 0
            %2568 = vmatpush1.bf16.msra.mxu0 %v2543
            %2569 = vmatprep.subr.bf16.mxu0 0
            %2570 = vmatpush1.bf16.msra.mxu0 %v2542
            %2571 = vmatprep.subr.bf16.mxu0 0
            %2572 = vmatpush1.bf16.msra.mxu0 %v2541
            %2573 = vmatprep.subr.bf16.mxu0 0
            %2574 = vmatpush2.bf16.msra.mxu0 0
            %2575 = vmatprep.subr.bf16.mxu0 0
            %2576 = vmatpush2.bf16.msra.mxu0 0
            %2577 = vmatprep.subr.bf16.mxu0 0
            %2578 = vmatpush2.bf16.msra.mxu0 0
            %2579 = vmatprep.subr.bf16.mxu0 0
            %2580 = vmatpush2.bf16.msra.mxu0 0
            %2581 = vmatprep.subr.bf16.mxu0 0
            %2582 = vmatpush2.bf16.msra.mxu0 0
            %2583 = vmatprep.subr.bf16.mxu0 0
            %2584 = vmatpush2.bf16.msra.mxu0 0
            %2585 = vmatprep.subr.bf16.mxu0 0
            %2586 = vmatpush2.bf16.msra.mxu0 0
            %2587 = vmatprep.subr.bf16.mxu0 0
            %2588 = vmatpush2.bf16.msra.mxu0 0
            %2589 = vmatprep.mubr.bf16.mxu0 0
            %2590 = vmatmul.mubr.bf16.gmra.mxu0 %v2485
            %v2591 = vpop.f32.mrf.mxu0
            %v2592 = vadd.f32 %v2507, %v2591
            %v2593 = vpop.f32.mrf.mxu0
            %v2594 = vpop.f32.mrf.mxu0
            %v2595 = vpop.f32.mrf.mxu0
            %2596 = vdwg.mxu0
            %v2597 = vmax.f32 %v2592, 0.0
            %v2598 = vpack.c.bf16 %v2597, %v2597
            %v2599 = vld [vmem:[#allocation13] sm:$0xf]
            %v2600 = vld [vmem:[#allocation13 + $0x4] sm:$0xf]
            %v2601 = vld [vmem:[#allocation13 + $0x8] sm:$0xf]
            %v2602 = vld [vmem:[#allocation13 + $0xc] sm:$0xf]
            %v2603 = vld [vmem:[#allocation13 + $0x10] sm:$0xf]
            %v2604 = vld [vmem:[#allocation13 + $0x14] sm:$0xf]
            %v2605 = vld [vmem:[#allocation13 + $0x18] sm:$0xf]
            %v2606 = vld [vmem:[#allocation13 + $0x1c] sm:$0xf]
            %v2607 = vld [vmem:[#allocation13 + $0x20] sm:$0xf]
            %v2608 = vld [vmem:[#allocation13 + $0x24] sm:$0xf]
            %v2609 = vld [vmem:[#allocation13 + $0x28] sm:$0xf]
            %v2610 = vld [vmem:[#allocation13 + $0x2c] sm:$0xf]
            %v2611 = vld [vmem:[#allocation13 + $0x30] sm:$0xf]
            %v2612 = vld [vmem:[#allocation13 + $0x34] sm:$0xf]
            %v2613 = vld [vmem:[#allocation13 + $0x38] sm:$0xf]
            %v2614 = vld [vmem:[#allocation13 + $0x3c] sm:$0xf]
            %v2615 = vld [vmem:[%s10] sm:$0x1]
            %v2617 = vlaneseq
            %v2618 = vshrl.u32 %v2617, 7
            %v2619 = vsub.s32 0, %v2618
            %v2620 = vrot.slane %v2615, %v2619
            %v2638 = vunpack.c.l.b16 %v2599
            %v2639 = vunpack.c.l.b16 %v2600
            %v2640 = vunpack.c.l.b16 %v2601
            %v2641 = vunpack.c.l.b16 %v2602
            %v2642 = vunpack.c.l.b16 %v2603
            %v2643 = vunpack.c.l.b16 %v2604
            %v2644 = vunpack.c.l.b16 %v2605
            %v2645 = vunpack.c.l.b16 %v2606
            %v2646 = vunpack.c.l.b16 %v2607
            %v2647 = vunpack.c.l.b16 %v2608
            %v2648 = vunpack.c.l.b16 %v2609
            %v2649 = vunpack.c.l.b16 %v2610
            %v2650 = vunpack.c.l.b16 %v2611
            %v2651 = vunpack.c.l.b16 %v2612
            %v2652 = vunpack.c.l.b16 %v2613
            %v2653 = vunpack.c.l.b16 %v2614
            %v2654 = vpack.c.b16 %v2639, %v2638
            %v2655 = vpack.c.b16 %v2641, %v2640
            %v2656 = vpack.c.b16 %v2643, %v2642
            %v2657 = vpack.c.b16 %v2645, %v2644
            %v2658 = vpack.c.b16 %v2647, %v2646
            %v2659 = vpack.c.b16 %v2649, %v2648
            %v2660 = vpack.c.b16 %v2651, %v2650
            %v2661 = vpack.c.b16 %v2653, %v2652
            %2670 = vmatprep.subr.bf16.mxu0 0
            %2671 = vmatpush1.bf16.msra.mxu0 %v2661
            %2672 = vmatprep.subr.bf16.mxu0 0
            %2673 = vmatpush1.bf16.msra.mxu0 %v2660
            %2674 = vmatprep.subr.bf16.mxu0 0
            %2675 = vmatpush1.bf16.msra.mxu0 %v2659
            %2676 = vmatprep.subr.bf16.mxu0 0
            %2677 = vmatpush1.bf16.msra.mxu0 %v2658
            %2678 = vmatprep.subr.bf16.mxu0 0
            %2679 = vmatpush1.bf16.msra.mxu0 %v2657
            %2680 = vmatprep.subr.bf16.mxu0 0
            %2681 = vmatpush1.bf16.msra.mxu0 %v2656
            %2682 = vmatprep.subr.bf16.mxu0 0
            %2683 = vmatpush1.bf16.msra.mxu0 %v2655
            %2684 = vmatprep.subr.bf16.mxu0 0
            %2685 = vmatpush1.bf16.msra.mxu0 %v2654
            %2686 = vmatprep.subr.bf16.mxu0 0
            %2687 = vmatpush2.bf16.msra.mxu0 0
            %2688 = vmatprep.subr.bf16.mxu0 0
            %2689 = vmatpush2.bf16.msra.mxu0 0
            %2690 = vmatprep.subr.bf16.mxu0 0
            %2691 = vmatpush2.bf16.msra.mxu0 0
            %2692 = vmatprep.subr.bf16.mxu0 0
            %2693 = vmatpush2.bf16.msra.mxu0 0
            %2694 = vmatprep.subr.bf16.mxu0 0
            %2695 = vmatpush2.bf16.msra.mxu0 0
            %2696 = vmatprep.subr.bf16.mxu0 0
            %2697 = vmatpush2.bf16.msra.mxu0 0
            %2698 = vmatprep.subr.bf16.mxu0 0
            %2699 = vmatpush2.bf16.msra.mxu0 0
            %2700 = vmatprep.subr.bf16.mxu0 0
            %2701 = vmatpush2.bf16.msra.mxu0 0
            %2702 = vmatprep.mubr.bf16.mxu0 0
            %2703 = vmatmul.mubr.bf16.gmra.mxu0 %v2598
            %v2704 = vpop.f32.mrf.mxu0
            %v2705 = vadd.f32 %v2620, %v2704
            %v2706 = vpop.f32.mrf.mxu0
            %v2707 = vpop.f32.mrf.mxu0
            %v2708 = vpop.f32.mrf.mxu0
            %2709 = vdwg.mxu0
            %2710 = vst [vmem:[#allocation15] sm:$0xff] %v2705
          $region112: #{tpu_custom_call.1} parent=103 // pred_fallthru
            _
        $region104: #{tpu_custom_call.1} parent=63 // pred_fallthru
          _
        // Predicated region
        $region113: #{tpu_custom_call.1} parent=63 // pred_check
          %p2711 = pneg %p307
        $region114: #{tpu_custom_call.1} parent=63 // pred_check_branch
          %2713 = sbr.rel (%p2711) target = $region116
        $region115: #{tpu_custom_call.1} parent=63 // pred_region
          %s2715 = ssub.s32 128, 128
          %2716 = vsyncadd [#allocation6], %s2715
          %s2718 = sshll.u32 [#allocation15], 4
          %s2719 = int_to_ptr.vmem [resolvable:$true] %s2718
          %2721 = dma.vmem_to_hbm [thread:$0]  %s2719, 128, %s11, [#allocation6]
        $region116: #{tpu_custom_call.1} parent=63 // pred_fallthru
          _
        // Predicated region
        $region117: #{tpu_custom_call.1} parent=63 // pred_check
          %p2722 = pneg %p307
        $region118: #{tpu_custom_call.1} parent=63 // pred_check_branch
          %2724 = sbr.rel (%p2722) target = $region120
        $region119: #{tpu_custom_call.1} parent=63 // pred_region
          %2725 = dma.done [#allocation6], 128
        $region120: #{tpu_custom_call.1} parent=63 // pred_fallthru
          _
      $region64: #{tpu_custom_call.1} parent=5 // pred_fallthru
        _
      %p2726 = scmp.le.s32.totalorder 2, %s21
      // Predicated region
      $region121: #{tpu_custom_call.1} parent=5 // pred_check
        %p2727 = pneg %p2726
      $region122: #{tpu_custom_call.1} parent=5 // pred_check_branch
        %2729 = sbr.rel (%p2727) target = $region124
      $region123: #{tpu_custom_call.1} parent=5 // pred_region
        %s2730 = ssub.s32 %s21, 2
      $region124: #{tpu_custom_call.1} parent=5 // pred_fallthru
        _
    $region6: #{tpu_custom_call.1} parent=1 // loop_footer
      %s25 = sadd.s32 1, %s21
    $region7: #{tpu_custom_call.1} parent=1 // loop_footer_branch
      %20 = sbr.rel target = $region3
    $region8: #{tpu_custom_call.1} parent=1 // loop_exit
      _
    %2731 = vsyncpa [#allocation5], 1
    %s2732 = scalar_lea.sflag [#allocation5], 1
    %2733 = vsyncpa %s2732, 1
    %2734 = vsyncpa [#allocation8], 1
    %2735 = vsyncpa [#allocation14], 1
    %2736 = vsyncpa [#allocation6], 1
    %s2737 = scalar_lea.sflag [#allocation6], 1
    %2738 = vsyncpa %s2737, 1

</llo_original>
